<compile_context>
chip_gen: v7x
topology: tpu7x:2x2x1
jax: 0.10.0
libtpu: 0.0.40
codegen_flags: <defaults>
</compile_context>

<pallas_src>
import functools

import jax
import jax.numpy as jnp
from jax.experimental import pallas as pl
from jax.experimental.pallas import tpu as pltpu


def _round_up(x, m):
    return (x + m - 1) // m * m


def _vmem_limit_bytes(bb, tc, ip, hp, op, dot_itemsize):
    """Explicit scoped-VMEM budget for the fused kernel (with 2x buffering)."""
    need = 2 * bb * tc * ip * dot_itemsize                       # x blocks
    need += 2 * bb * tc * op * 4                                 # y blocks (f32)
    need += 2 * (ip * hp + hp * hp + hp * op) * dot_itemsize     # weights
    need += 2 * (hp + op) * 4                                    # biases
    need += bb * hp * 4 + bb * tc * hp * 4                       # scratch
    need += 2 << 20                                              # compiler slack
    # Floor 32 MiB (v5e's default scoped limit is 16 MiB of 128 MiB physical),
    # cap 48 MiB (v7x physical VMEM is 64 MiB; leave headroom).
    return int(min(max(need, 32 << 20), 48 << 20))


# -----------------------------------------------------------------------------
# Fused kernel: input projection -> serial tanh recurrence -> output projection,
# all per (batch-block, time-chunk) grid step.  Hidden state carried in VMEM.
# -----------------------------------------------------------------------------
def _fused_rnn_kernel(x_ref, wih_ref, whh_ref, wout_ref, bin_ref, bout_ref,
                      y_ref, h_carry_ref, work_ref):
    c = pl.program_id(1)                    # time-chunk index (serial axis)
    bb, tc, ip = x_ref.shape
    hp = whh_ref.shape[0]
    op = y_ref.shape[2]

    @pl.when(c == 0)
    def _():                                # start of a batch block: h_0 = 0
        h_carry_ref[...] = jnp.zeros_like(h_carry_ref)

    # -- Phase 1: input projection for the whole chunk (one big MXU matmul). --
    x2 = x_ref[...].reshape(bb * tc, ip)
    xp = jnp.dot(x2, wih_ref[...], preferred_element_type=jnp.float32)
    work_ref[...] = (xp + bin_ref[...]).reshape(bb, tc, hp)   # f32 workspace

    # -- Phase 2: serial recurrence; only h @ W_hh^T is on the critical path. -
    # Static (fully inlined) loop: tc is small (8..64) and all per-step slices
    # are static.  For very large tc switch to lax.fori_loop(unroll=k) to bound
    # compile time / live ranges.
    # TODO(synk): hold W_hh^T resident in MXU weight staging across the chunk
    # (pltpu.matmul_push_rhs / matmul_acc_lhs) instead of re-pushing it in
    # every jnp.dot; skipped to keep the lowering simple and portable.
    whh = whh_ref[...]
    h = h_carry_ref[...]
    for tt in range(tc):
        rec = jnp.dot(h.astype(whh.dtype), whh,
                      preferred_element_type=jnp.float32)      # (bb, hp)
        h = jnp.tanh(work_ref[:, tt, :] + rec)                 # f32 elementwise
        work_ref[:, tt, :] = h           # overwrite x_proj slot (off crit path)
    h_carry_ref[...] = h

    # -- Phase 3: output projection for the whole chunk (one big MXU matmul). -
    h2 = work_ref[...].reshape(bb * tc, hp).astype(wout_ref.dtype)
    y2 = jnp.dot(h2, wout_ref[...], preferred_element_type=jnp.float32)
    y_ref[...] = (y2 + bout_ref[...]).reshape(bb, tc, op).astype(y_ref.dtype)


# -----------------------------------------------------------------------------
# Wrapper: padding + layout plumbing, single pallas_call.
# -----------------------------------------------------------------------------
@functools.partial(jax.jit, static_argnames=("hidden_size", "time_chunk",
                                             "batch_block", "dot_dtype"))
def simple_rnn_forward(x, params, *, hidden_size, time_chunk=32,
                       batch_block=256, dot_dtype=jnp.bfloat16):
    """x: (B, T, I) float32 -> (B, T, O) float32."""
    B, T, I = x.shape
    H = hidden_size
    O = params["w_out"].shape[0]

    dd = jnp.dtype(dot_dtype)
    sub = 16 if dd == jnp.dtype(jnp.bfloat16) else 8   # bf16 packs 16 rows/vreg
    Ip = _round_up(I, 128)
    Hp = _round_up(H, 128)
    Op = _round_up(O, 128)
    TC = min(_round_up(time_chunk, 8), _round_up(T, 8))   # multiple of 8
    Tp = _round_up(T, TC)
    Bp = _round_up(B, sub)
    BB = min(_round_up(batch_block, sub), Bp)
    Bp = _round_up(Bp, BB)
    nb, nt = Bp // BB, Tp // TC

    f32 = jnp.float32
    # Pre-transposed, zero-padded weights in the matmul dtype (zero padding
    # keeps padded hidden lanes exactly 0 through the recurrence).
    wih_t = jnp.pad(params["w_ih"].T.astype(f32),
                    ((0, Ip - I), (0, Hp - H))).astype(dd)     # (Ip, Hp)
    whh_t = jnp.pad(params["w_hh"].T.astype(f32),
                    ((0, Hp - H), (0, Hp - H))).astype(dd)     # (Hp, Hp)
    wout_t = jnp.pad(params["w_out"].T.astype(f32),
                     ((0, Hp - H), (0, Op - O))).astype(dd)    # (Hp, Op)
    # Biases stay f32 (added after f32 accumulation).
    b_in = jnp.pad((params["b_ih"] + params["b_hh"]).astype(f32),
                   (0, Hp - H)).reshape(1, Hp)
    b_out = jnp.pad(params["b_out"].astype(f32),
                    (0, Op - O)).reshape(1, Op)

    # Natural (B, T, I) layout (no wrapper transpose), zero-padded, pre-cast to
    # the matmul dtype so activation DMA bytes are halved for bf16.
    x_p = jnp.pad(x.astype(dd), ((0, Bp - B), (0, Tp - T), (0, Ip - I)))

    vmem_limit = _vmem_limit_bytes(BB, TC, Ip, Hp, Op, dd.itemsize)

    y = pl.pallas_call(
        _fused_rnn_kernel,
        out_shape=jax.ShapeDtypeStruct((Bp, Tp, Op), f32),
        grid_spec=pltpu.PrefetchScalarGridSpec(
            num_scalar_prefetch=0,
            grid=(nb, nt),
            in_specs=[
                pl.BlockSpec((BB, TC, Ip), lambda b, c: (b, c, 0)),  # x chunk
                pl.BlockSpec((Ip, Hp), lambda b, c: (0, 0)),         # W_ih^T
                pl.BlockSpec((Hp, Hp), lambda b, c: (0, 0)),         # W_hh^T
                pl.BlockSpec((Hp, Op), lambda b, c: (0, 0)),         # W_out^T
                pl.BlockSpec((1, Hp), lambda b, c: (0, 0)),          # b_ih+b_hh
                pl.BlockSpec((1, Op), lambda b, c: (0, 0)),          # b_out
            ],
            out_specs=pl.BlockSpec((BB, TC, Op), lambda b, c: (b, c, 0)),
            scratch_shapes=[
                pltpu.VMEM((BB, Hp), f32),       # hidden carry across chunks
                pltpu.VMEM((BB, TC, Hp), f32),   # x_proj -> h chunk workspace
            ],
        ),
        compiler_params=pltpu.CompilerParams(
            # Batch blocks are independent (v7x: sharded across both TCs);
            # time chunks carry hidden state -> serial ("arbitrary").
            dimension_semantics=("parallel", "arbitrary"),
            vmem_limit_bytes=vmem_limit,
        ),
    )(x_p, wih_t, whh_t, wout_t, b_in, b_out)

    # Drop all padding; already in (B, T, O) layout — no final transpose.
    return y[:B, :T, :O]


# -----------------------------------------------------------------------------
# Params / reference
# -----------------------------------------------------------------------------
def init_params(key, input_size, hidden_size, output_size):
    """Deterministic init mirroring PyTorch's U(-1/sqrt(H), 1/sqrt(H))."""
    ks = jax.random.split(key, 6)
    bound = 1.0 / jnp.sqrt(hidden_size)
    u = lambda k, shape: jax.random.uniform(
        k, shape, jnp.float32, minval=-bound, maxval=bound)
    return {
        "w_ih": u(ks[0], (hidden_size, input_size)),
        "w_hh": u(ks[1], (hidden_size, hidden_size)),
        "b_ih": u(ks[2], (hidden_size,)),
        "b_hh": u(ks[3], (hidden_size,)),
        "w_out": u(ks[4], (output_size, hidden_size)),
        "b_out": u(ks[5], (output_size,)),
    }


def _reference_forward(x, params):
    """Pure-JAX reference matching the PyTorch loop."""
    B, T, _ = x.shape
    H = params["w_hh"].shape[0]
    h = jnp.zeros((B, H), jnp.float32)
    outs = []
    for t in range(T):
        h = jnp.tanh(x[:, t, :] @ params["w_ih"].T + params["b_ih"]
                     + h @ params["w_hh"].T + params["b_hh"])
        outs.append(h @ params["w_out"].T + params["b_out"])
    return jnp.stack(outs, axis=1)


if __name__ == "__main__":
    B, T, I, H, O = 2, 8, 16, 32, 8

    key = jax.random.PRNGKey(0)
    kx, kp = jax.random.split(key)
    x = jax.random.normal(kx, (B, T, I), jnp.float32)
    params = init_params(kp, I, H, O)

    y_ref = _reference_forward(x, params)

    # f32 matmul path: bit-close to the reference.
    y_f32 = jax.block_until_ready(
        simple_rnn_forward(x, params, hidden_size=H, dot_dtype=jnp.float32))
    assert y_f32.shape == (B, T, O), y_f32.shape
    err_f32 = float(jnp.max(jnp.abs(y_f32 - y_ref)))
    assert err_f32 < 1e-5, err_f32

    # Default bf16-operand path (f32 accumulate / tanh): looser tolerance.
    y_bf16 = jax.block_until_ready(
        simple_rnn_forward(x, params, hidden_size=H))
    assert y_bf16.shape == (B, T, O), y_bf16.shape
    err_bf16 = float(jnp.max(jnp.abs(y_bf16 - y_ref)))
    assert err_bf16 < 1e-1, err_bf16

    print("KERNEL_OK")
</pallas_src>

<mosaic_0001>
module attributes {stable_mosaic.version = 11 : i64} {
  func.func @_fused_rnn_kernel(%arg0: i32, %arg1: i32, %arg2: memref<8x8x128xf32, #tpu.memory_space<vmem>>, %arg3: memref<128x128xf32, #tpu.memory_space<vmem>>, %arg4: memref<128x128xf32, #tpu.memory_space<vmem>>, %arg5: memref<128x128xf32, #tpu.memory_space<vmem>>, %arg6: memref<1x128xf32, #tpu.memory_space<vmem>>, %arg7: memref<1x128xf32, #tpu.memory_space<vmem>>, %arg8: memref<8x8x128xf32, #tpu.memory_space<vmem>>, %arg9: memref<8x128xf32, #tpu.memory_space<vmem>>, %arg10: memref<8x8x128xf32, #tpu.memory_space<vmem>>) attributes {dimension_semantics = [#tpu.dimension_semantics<parallel>, #tpu.dimension_semantics<arbitrary>], iteration_bounds = array<i64: 1, 1>, scalar_prefetch = 0 : i64, scratch_operands = 2 : i64, tpu.core_type = #tpu.core_type<tc>, window_params = [{transform_indices = @transform_0, window_bounds = array<i64: 8, 8, 128>}, {pipeline_mode = #tpu.pipeline_mode<synchronous>, transform_indices = @transform_1, window_bounds = array<i64: 128, 128>}, {pipeline_mode = #tpu.pipeline_mode<synchronous>, transform_indices = @transform_2, window_bounds = array<i64: 128, 128>}, {pipeline_mode = #tpu.pipeline_mode<synchronous>, transform_indices = @transform_3, window_bounds = array<i64: 128, 128>}, {pipeline_mode = #tpu.pipeline_mode<synchronous>, transform_indices = @transform_4, window_bounds = array<i64: 1, 128>}, {pipeline_mode = #tpu.pipeline_mode<synchronous>, transform_indices = @transform_5, window_bounds = array<i64: 1, 128>}, {transform_indices = @transform_6, window_bounds = array<i64: 8, 8, 128>}]} {
    %c0_i32 = arith.constant 0 : i32
    %0 = arith.cmpi eq, %arg1, %c0_i32 : i32
    %1 = arith.extui %0 : i1 to i32
    %c0_i32_0 = arith.constant 0 : i32
    %2 = arith.cmpi ne, %1, %c0_i32_0 : i32
    scf.if %2 {
      %cst_76 = arith.constant 0.000000e+00 : f32
      %88 = vector.broadcast %cst_76 : f32 to vector<8x128xf32>
      %c0_77 = arith.constant 0 : index
      %c0_78 = arith.constant 0 : index
      %89 = vector.load %arg9[%c0_77, %c0_78] : memref<8x128xf32, #tpu.memory_space<vmem>>, vector<8x128xf32>
      tpu.vector_store %arg9[%c0_77, %c0_78], %88 {strides = array<i32>} : memref<8x128xf32, #tpu.memory_space<vmem>>, vector<8x128xf32>,
    } else {
    }
    %c0 = arith.constant 0 : index
    %c0_1 = arith.constant 0 : index
    %c0_2 = arith.constant 0 : index
    %3 = vector.load %arg2[%c0, %c0_1, %c0_2] : memref<8x8x128xf32, #tpu.memory_space<vmem>>, vector<8x8x128xf32>
    %4 = vector.shape_cast %3 : vector<8x8x128xf32> to vector<64x128xf32>
    %c0_3 = arith.constant 0 : index
    %c0_4 = arith.constant 0 : index
    %5 = vector.load %arg3[%c0_3, %c0_4] : memref<128x128xf32, #tpu.memory_space<vmem>>, vector<128x128xf32>
    %cst = arith.constant dense<0.000000e+00> : vector<64x128xf32>
    %6 = tpu.matmul %4, %5, %cst {dimension_numbers = #tpu.dot_dimension_numbers<[1], [0], [0], [1], [0, 0, 1, 1], [], []>} : vector<64x128xf32>, vector<128x128xf32>, vector<64x128xf32> -> vector<64x128xf32>
    %c0_5 = arith.constant 0 : index
    %c0_6 = arith.constant 0 : index
    %7 = vector.load %arg6[%c0_5, %c0_6] : memref<1x128xf32, #tpu.memory_space<vmem>>, vector<1x128xf32>
    %8 = vector.broadcast %7 : vector<1x128xf32> to vector<64x128xf32>
    %9 = arith.addf %6, %8 : vector<64x128xf32>
    %10 = vector.shape_cast %9 : vector<64x128xf32> to vector<8x8x128xf32>
    %c0_7 = arith.constant 0 : index
    %c0_8 = arith.constant 0 : index
    %c0_9 = arith.constant 0 : index
    %11 = vector.load %arg10[%c0_7, %c0_8, %c0_9] : memref<8x8x128xf32, #tpu.memory_space<vmem>>, vector<8x8x128xf32>
    tpu.vector_store %arg10[%c0_7, %c0_8, %c0_9], %10 {strides = array<i32>} : memref<8x8x128xf32, #tpu.memory_space<vmem>>, vector<8x8x128xf32>,
    %c0_10 = arith.constant 0 : index
    %c0_11 = arith.constant 0 : index
    %12 = vector.load %arg4[%c0_10, %c0_11] : memref<128x128xf32, #tpu.memory_space<vmem>>, vector<128x128xf32>
    %c0_12 = arith.constant 0 : index
    %c0_13 = arith.constant 0 : index
    %13 = vector.load %arg9[%c0_12, %c0_13] : memref<8x128xf32, #tpu.memory_space<vmem>>, vector<8x128xf32>
    %cst_14 = arith.constant dense<0.000000e+00> : vector<8x128xf32>
    %14 = tpu.matmul %13, %12, %cst_14 {dimension_numbers = #tpu.dot_dimension_numbers<[1], [0], [0], [1], [0, 0, 1, 1], [], []>} : vector<8x128xf32>, vector<128x128xf32>, vector<8x128xf32> -> vector<8x128xf32>
    %c0_15 = arith.constant 0 : index
    %c0_16 = arith.constant 0 : index
    %c0_17 = arith.constant 0 : index
    %15 = vector.load %arg10[%c0_15, %c0_16, %c0_17] : memref<8x8x128xf32, #tpu.memory_space<vmem>>, vector<8x1x128xf32>
    %16 = vector.shape_cast %15 : vector<8x1x128xf32> to vector<8x128xf32>
    %17 = arith.addf %16, %14 : vector<8x128xf32>
    %18 = math.tanh %17 : vector<8x128xf32>
    %c0_18 = arith.constant 0 : index
    %c0_19 = arith.constant 0 : index
    %c0_20 = arith.constant 0 : index
    %19 = vector.load %arg10[%c0_18, %c0_19, %c0_20] : memref<8x8x128xf32, #tpu.memory_space<vmem>>, vector<8x1x128xf32>
    %20 = vector.shape_cast %19 : vector<8x1x128xf32> to vector<8x128xf32>
    %21 = vector.shape_cast %18 : vector<8x128xf32> to vector<8x1x128xf32>
    tpu.vector_store %arg10[%c0_18, %c0_19, %c0_20], %21 {strides = array<i32>} : memref<8x8x128xf32, #tpu.memory_space<vmem>>, vector<8x1x128xf32>,
    %cst_21 = arith.constant dense<0.000000e+00> : vector<8x128xf32>
    %22 = tpu.matmul %18, %12, %cst_21 {dimension_numbers = #tpu.dot_dimension_numbers<[1], [0], [0], [1], [0, 0, 1, 1], [], []>} : vector<8x128xf32>, vector<128x128xf32>, vector<8x128xf32> -> vector<8x128xf32>
    %c0_22 = arith.constant 0 : index
    %c1 = arith.constant 1 : index
    %c0_23 = arith.constant 0 : index
    %23 = vector.load %arg10[%c0_22, %c1, %c0_23] : memref<8x8x128xf32, #tpu.memory_space<vmem>>, vector<8x1x128xf32>
    %24 = vector.shape_cast %23 : vector<8x1x128xf32> to vector<8x128xf32>
    %25 = arith.addf %24, %22 : vector<8x128xf32>
    %26 = math.tanh %25 : vector<8x128xf32>
    %c0_24 = arith.constant 0 : index
    %c1_25 = arith.constant 1 : index
    %c0_26 = arith.constant 0 : index
    %27 = vector.load %arg10[%c0_24, %c1_25, %c0_26] : memref<8x8x128xf32, #tpu.memory_space<vmem>>, vector<8x1x128xf32>
    %28 = vector.shape_cast %27 : vector<8x1x128xf32> to vector<8x128xf32>
    %29 = vector.shape_cast %26 : vector<8x128xf32> to vector<8x1x128xf32>
    tpu.vector_store %arg10[%c0_24, %c1_25, %c0_26], %29 {strides = array<i32>} : memref<8x8x128xf32, #tpu.memory_space<vmem>>, vector<8x1x128xf32>,
    %cst_27 = arith.constant dense<0.000000e+00> : vector<8x128xf32>
    %30 = tpu.matmul %26, %12, %cst_27 {dimension_numbers = #tpu.dot_dimension_numbers<[1], [0], [0], [1], [0, 0, 1, 1], [], []>} : vector<8x128xf32>, vector<128x128xf32>, vector<8x128xf32> -> vector<8x128xf32>
    %c0_28 = arith.constant 0 : index
    %c2 = arith.constant 2 : index
    %c0_29 = arith.constant 0 : index
    %31 = vector.load %arg10[%c0_28, %c2, %c0_29] : memref<8x8x128xf32, #tpu.memory_space<vmem>>, vector<8x1x128xf32>
    %32 = vector.shape_cast %31 : vector<8x1x128xf32> to vector<8x128xf32>
    %33 = arith.addf %32, %30 : vector<8x128xf32>
    %34 = math.tanh %33 : vector<8x128xf32>
    %c0_30 = arith.constant 0 : index
    %c2_31 = arith.constant 2 : index
    %c0_32 = arith.constant 0 : index
    %35 = vector.load %arg10[%c0_30, %c2_31, %c0_32] : memref<8x8x128xf32, #tpu.memory_space<vmem>>, vector<8x1x128xf32>
    %36 = vector.shape_cast %35 : vector<8x1x128xf32> to vector<8x128xf32>
    %37 = vector.shape_cast %34 : vector<8x128xf32> to vector<8x1x128xf32>
    tpu.vector_store %arg10[%c0_30, %c2_31, %c0_32], %37 {strides = array<i32>} : memref<8x8x128xf32, #tpu.memory_space<vmem>>, vector<8x1x128xf32>,
    %cst_33 = arith.constant dense<0.000000e+00> : vector<8x128xf32>
    %38 = tpu.matmul %34, %12, %cst_33 {dimension_numbers = #tpu.dot_dimension_numbers<[1], [0], [0], [1], [0, 0, 1, 1], [], []>} : vector<8x128xf32>, vector<128x128xf32>, vector<8x128xf32> -> vector<8x128xf32>
    %c0_34 = arith.constant 0 : index
    %c3 = arith.constant 3 : index
    %c0_35 = arith.constant 0 : index
    %39 = vector.load %arg10[%c0_34, %c3, %c0_35] : memref<8x8x128xf32, #tpu.memory_space<vmem>>, vector<8x1x128xf32>
    %40 = vector.shape_cast %39 : vector<8x1x128xf32> to vector<8x128xf32>
    %41 = arith.addf %40, %38 : vector<8x128xf32>
    %42 = math.tanh %41 : vector<8x128xf32>
    %c0_36 = arith.constant 0 : index
    %c3_37 = arith.constant 3 : index
    %c0_38 = arith.constant 0 : index
    %43 = vector.load %arg10[%c0_36, %c3_37, %c0_38] : memref<8x8x128xf32, #tpu.memory_space<vmem>>, vector<8x1x128xf32>
    %44 = vector.shape_cast %43 : vector<8x1x128xf32> to vector<8x128xf32>
    %45 = vector.shape_cast %42 : vector<8x128xf32> to vector<8x1x128xf32>
    tpu.vector_store %arg10[%c0_36, %c3_37, %c0_38], %45 {strides = array<i32>} : memref<8x8x128xf32, #tpu.memory_space<vmem>>, vector<8x1x128xf32>,
    %cst_39 = arith.constant dense<0.000000e+00> : vector<8x128xf32>
    %46 = tpu.matmul %42, %12, %cst_39 {dimension_numbers = #tpu.dot_dimension_numbers<[1], [0], [0], [1], [0, 0, 1, 1], [], []>} : vector<8x128xf32>, vector<128x128xf32>, vector<8x128xf32> -> vector<8x128xf32>
    %c0_40 = arith.constant 0 : index
    %c4 = arith.constant 4 : index
    %c0_41 = arith.constant 0 : index
    %47 = vector.load %arg10[%c0_40, %c4, %c0_41] : memref<8x8x128xf32, #tpu.memory_space<vmem>>, vector<8x1x128xf32>
    %48 = vector.shape_cast %47 : vector<8x1x128xf32> to vector<8x128xf32>
    %49 = arith.addf %48, %46 : vector<8x128xf32>
    %50 = math.tanh %49 : vector<8x128xf32>
    %c0_42 = arith.constant 0 : index
    %c4_43 = arith.constant 4 : index
    %c0_44 = arith.constant 0 : index
    %51 = vector.load %arg10[%c0_42, %c4_43, %c0_44] : memref<8x8x128xf32, #tpu.memory_space<vmem>>, vector<8x1x128xf32>
    %52 = vector.shape_cast %51 : vector<8x1x128xf32> to vector<8x128xf32>
    %53 = vector.shape_cast %50 : vector<8x128xf32> to vector<8x1x128xf32>
    tpu.vector_store %arg10[%c0_42, %c4_43, %c0_44], %53 {strides = array<i32>} : memref<8x8x128xf32, #tpu.memory_space<vmem>>, vector<8x1x128xf32>,
    %cst_45 = arith.constant dense<0.000000e+00> : vector<8x128xf32>
    %54 = tpu.matmul %50, %12, %cst_45 {dimension_numbers = #tpu.dot_dimension_numbers<[1], [0], [0], [1], [0, 0, 1, 1], [], []>} : vector<8x128xf32>, vector<128x128xf32>, vector<8x128xf32> -> vector<8x128xf32>
    %c0_46 = arith.constant 0 : index
    %c5 = arith.constant 5 : index
    %c0_47 = arith.constant 0 : index
    %55 = vector.load %arg10[%c0_46, %c5, %c0_47] : memref<8x8x128xf32, #tpu.memory_space<vmem>>, vector<8x1x128xf32>
    %56 = vector.shape_cast %55 : vector<8x1x128xf32> to vector<8x128xf32>
    %57 = arith.addf %56, %54 : vector<8x128xf32>
    %58 = math.tanh %57 : vector<8x128xf32>
    %c0_48 = arith.constant 0 : index
    %c5_49 = arith.constant 5 : index
    %c0_50 = arith.constant 0 : index
    %59 = vector.load %arg10[%c0_48, %c5_49, %c0_50] : memref<8x8x128xf32, #tpu.memory_space<vmem>>, vector<8x1x128xf32>
    %60 = vector.shape_cast %59 : vector<8x1x128xf32> to vector<8x128xf32>
    %61 = vector.shape_cast %58 : vector<8x128xf32> to vector<8x1x128xf32>
    tpu.vector_store %arg10[%c0_48, %c5_49, %c0_50], %61 {strides = array<i32>} : memref<8x8x128xf32, #tpu.memory_space<vmem>>, vector<8x1x128xf32>,
    %cst_51 = arith.constant dense<0.000000e+00> : vector<8x128xf32>
    %62 = tpu.matmul %58, %12, %cst_51 {dimension_numbers = #tpu.dot_dimension_numbers<[1], [0], [0], [1], [0, 0, 1, 1], [], []>} : vector<8x128xf32>, vector<128x128xf32>, vector<8x128xf32> -> vector<8x128xf32>
    %c0_52 = arith.constant 0 : index
    %c6 = arith.constant 6 : index
    %c0_53 = arith.constant 0 : index
    %63 = vector.load %arg10[%c0_52, %c6, %c0_53] : memref<8x8x128xf32, #tpu.memory_space<vmem>>, vector<8x1x128xf32>
    %64 = vector.shape_cast %63 : vector<8x1x128xf32> to vector<8x128xf32>
    %65 = arith.addf %64, %62 : vector<8x128xf32>
    %66 = math.tanh %65 : vector<8x128xf32>
    %c0_54 = arith.constant 0 : index
    %c6_55 = arith.constant 6 : index
    %c0_56 = arith.constant 0 : index
    %67 = vector.load %arg10[%c0_54, %c6_55, %c0_56] : memref<8x8x128xf32, #tpu.memory_space<vmem>>, vector<8x1x128xf32>
    %68 = vector.shape_cast %67 : vector<8x1x128xf32> to vector<8x128xf32>
    %69 = vector.shape_cast %66 : vector<8x128xf32> to vector<8x1x128xf32>
    tpu.vector_store %arg10[%c0_54, %c6_55, %c0_56], %69 {strides = array<i32>} : memref<8x8x128xf32, #tpu.memory_space<vmem>>, vector<8x1x128xf32>,
    %cst_57 = arith.constant dense<0.000000e+00> : vector<8x128xf32>
    %70 = tpu.matmul %66, %12, %cst_57 {dimension_numbers = #tpu.dot_dimension_numbers<[1], [0], [0], [1], [0, 0, 1, 1], [], []>} : vector<8x128xf32>, vector<128x128xf32>, vector<8x128xf32> -> vector<8x128xf32>
    %c0_58 = arith.constant 0 : index
    %c7 = arith.constant 7 : index
    %c0_59 = arith.constant 0 : index
    %71 = vector.load %arg10[%c0_58, %c7, %c0_59] : memref<8x8x128xf32, #tpu.memory_space<vmem>>, vector<8x1x128xf32>
    %72 = vector.shape_cast %71 : vector<8x1x128xf32> to vector<8x128xf32>
    %73 = arith.addf %72, %70 : vector<8x128xf32>
    %74 = math.tanh %73 : vector<8x128xf32>
    %c0_60 = arith.constant 0 : index
    %c7_61 = arith.constant 7 : index
    %c0_62 = arith.constant 0 : index
    %75 = vector.load %arg10[%c0_60, %c7_61, %c0_62] : memref<8x8x128xf32, #tpu.memory_space<vmem>>, vector<8x1x128xf32>
    %76 = vector.shape_cast %75 : vector<8x1x128xf32> to vector<8x128xf32>
    %77 = vector.shape_cast %74 : vector<8x128xf32> to vector<8x1x128xf32>
    tpu.vector_store %arg10[%c0_60, %c7_61, %c0_62], %77 {strides = array<i32>} : memref<8x8x128xf32, #tpu.memory_space<vmem>>, vector<8x1x128xf32>,
    %c0_63 = arith.constant 0 : index
    %c0_64 = arith.constant 0 : index
    %78 = vector.load %arg9[%c0_63, %c0_64] : memref<8x128xf32, #tpu.memory_space<vmem>>, vector<8x128xf32>
    tpu.vector_store %arg9[%c0_63, %c0_64], %74 {strides = array<i32>} : memref<8x128xf32, #tpu.memory_space<vmem>>, vector<8x128xf32>,
    %c0_65 = arith.constant 0 : index
    %c0_66 = arith.constant 0 : index
    %c0_67 = arith.constant 0 : index
    %79 = vector.load %arg10[%c0_65, %c0_66, %c0_67] : memref<8x8x128xf32, #tpu.memory_space<vmem>>, vector<8x8x128xf32>
    %80 = vector.shape_cast %79 : vector<8x8x128xf32> to vector<64x128xf32>
    %c0_68 = arith.constant 0 : index
    %c0_69 = arith.constant 0 : index
    %81 = vector.load %arg5[%c0_68, %c0_69] : memref<128x128xf32, #tpu.memory_space<vmem>>, vector<128x128xf32>
    %cst_70 = arith.constant dense<0.000000e+00> : vector<64x128xf32>
    %82 = tpu.matmul %80, %81, %cst_70 {dimension_numbers = #tpu.dot_dimension_numbers<[1], [0], [0], [1], [0, 0, 1, 1], [], []>} : vector<64x128xf32>, vector<128x128xf32>, vector<64x128xf32> -> vector<64x128xf32>
    %c0_71 = arith.constant 0 : index
    %c0_72 = arith.constant 0 : index
    %83 = vector.load %arg7[%c0_71, %c0_72] : memref<1x128xf32, #tpu.memory_space<vmem>>, vector<1x128xf32>
    %84 = vector.broadcast %83 : vector<1x128xf32> to vector<64x128xf32>
    %85 = arith.addf %82, %84 : vector<64x128xf32>
    %86 = vector.shape_cast %85 : vector<64x128xf32> to vector<8x8x128xf32>
    %c0_73 = arith.constant 0 : index
    %c0_74 = arith.constant 0 : index
    %c0_75 = arith.constant 0 : index
    %87 = vector.load %arg8[%c0_73, %c0_74, %c0_75] : memref<8x8x128xf32, #tpu.memory_space<vmem>>, vector<8x8x128xf32>
    tpu.vector_store %arg8[%c0_73, %c0_74, %c0_75], %86 {strides = array<i32>} : memref<8x8x128xf32, #tpu.memory_space<vmem>>, vector<8x8x128xf32>,
    return
  }
  func.func @transform_0(%arg0: i32, %arg1: i32) -> (i32, i32, i32) {
    %c0_i32 = arith.constant 0 : i32
    %c0_i32_0 = arith.constant 0 : i32
    return %arg0, %arg1, %c0_i32 : i32, i32, i32
  }
  func.func @transform_1(%arg0: i32, %arg1: i32) -> (i32, i32) {
    %c0_i32 = arith.constant 0 : i32
    %c0_i32_0 = arith.constant 0 : i32
    %c0_i32_1 = arith.constant 0 : i32
    return %c0_i32, %c0_i32_0 : i32, i32
  }
  func.func @transform_2(%arg0: i32, %arg1: i32) -> (i32, i32) {
    %c0_i32 = arith.constant 0 : i32
    %c0_i32_0 = arith.constant 0 : i32
    %c0_i32_1 = arith.constant 0 : i32
    return %c0_i32, %c0_i32_0 : i32, i32
  }
  func.func @transform_3(%arg0: i32, %arg1: i32) -> (i32, i32) {
    %c0_i32 = arith.constant 0 : i32
    %c0_i32_0 = arith.constant 0 : i32
    %c0_i32_1 = arith.constant 0 : i32
    return %c0_i32, %c0_i32_0 : i32, i32
  }
  func.func @transform_4(%arg0: i32, %arg1: i32) -> (i32, i32) {
    %c0_i32 = arith.constant 0 : i32
    %c0_i32_0 = arith.constant 0 : i32
    %c0_i32_1 = arith.constant 0 : i32
    return %c0_i32, %c0_i32_0 : i32, i32
  }
  func.func @transform_5(%arg0: i32, %arg1: i32) -> (i32, i32) {
    %c0_i32 = arith.constant 0 : i32
    %c0_i32_0 = arith.constant 0 : i32
    %c0_i32_1 = arith.constant 0 : i32
    return %c0_i32, %c0_i32_0 : i32, i32
  }
  func.func @transform_6(%arg0: i32, %arg1: i32) -> (i32, i32, i32) {
    %c0_i32 = arith.constant 0 : i32
    %c0_i32_0 = arith.constant 0 : i32
    return %arg0, %arg1, %c0_i32 : i32, i32, i32
  }
}

</mosaic_0001>

<llo_original>
// kernel: simple_rnn_forward.1
$region0: #{simple_rnn_forward.1}
  #allocation0 [shape = 'u32[]', space=smem, size = 0x4, offset = 0x4, fixed_abs, tag = 'smem constant byte address 0x4 - core index']
  #allocation1 [shape = 'u32[144,128]{1,0:T(1,128)}', space=vmem, size = 0x12000, scoped, tag = 'internal scratch']
  #allocation2 [shape = 'f32[8,128]{1,0:T(8,128)}', space=vmem, size = 0x1000, scoped, tag = 'scratch operand']
  #allocation3 [shape = 'f32[8,8,128]{2,1,0:T(8,128)}', space=vmem, size = 0x8000, scoped, tag = 'scratch operand']
  %s0 = inlined_call_operand.vmem [shape: f32[8,8,128], index: 0, kind: input, shape index: {}]
  %s1 = inlined_call_operand.vmem [shape: f32[128,128], index: 1, kind: input, shape index: {}]
  %s2 = inlined_call_operand.vmem [shape: f32[128,128], index: 2, kind: input, shape index: {}]
  %s3 = inlined_call_operand.vmem [shape: f32[128,128], index: 3, kind: input, shape index: {}]
  %s4 = inlined_call_operand.vmem [shape: f32[1,128], index: 4, kind: input, shape index: {}]
  %s5 = inlined_call_operand.vmem [shape: f32[1,128], index: 5, kind: input, shape index: {}]
  %s6 = inlined_call_operand.vmem [shape: f32[8,8,128], index: 6, kind: output, shape index: {}]
  %s7 = sld [smem:[#allocation0]]
  $region38: #{simple_rnn_forward.1} parent=0
    _
  %s9 = ssub.s32 1, %s7
  %s10 = scalar_select 0, %s9, %s7
  // Predicated region
  $region2: #{simple_rnn_forward.1} parent=0 // pred_check
    _
  $region3: #{simple_rnn_forward.1} parent=0 // pred_check_branch
    %12 = sbr.rel (0) target = $region5
  $region4: #{simple_rnn_forward.1} parent=0 // pred_region
    _
  $region5: #{simple_rnn_forward.1} parent=0 // pred_fallthru
    _
  // Predicated region
  $region6: #{simple_rnn_forward.1} parent=0 // pred_check
    _
  $region7: #{simple_rnn_forward.1} parent=0 // pred_check_branch
    %14 = sbr.rel (0) target = $region9
  $region8: #{simple_rnn_forward.1} parent=0 // pred_region
    _
  $region9: #{simple_rnn_forward.1} parent=0 // pred_fallthru
    _
  // Predicated region
  $region10: #{simple_rnn_forward.1} parent=0 // pred_check
    _
  $region11: #{simple_rnn_forward.1} parent=0 // pred_check_branch
    %16 = sbr.rel (0) target = $region13
  $region12: #{simple_rnn_forward.1} parent=0 // pred_region
    _
  $region13: #{simple_rnn_forward.1} parent=0 // pred_fallthru
    _
  // Predicated region
  $region14: #{simple_rnn_forward.1} parent=0 // pred_check
    _
  $region15: #{simple_rnn_forward.1} parent=0 // pred_check_branch
    %18 = sbr.rel (0) target = $region17
  $region16: #{simple_rnn_forward.1} parent=0 // pred_region
    _
  $region17: #{simple_rnn_forward.1} parent=0 // pred_fallthru
    _
  // Predicated region
  $region18: #{simple_rnn_forward.1} parent=0 // pred_check
    _
  $region19: #{simple_rnn_forward.1} parent=0 // pred_check_branch
    %20 = sbr.rel (0) target = $region21
  $region20: #{simple_rnn_forward.1} parent=0 // pred_region
    _
  $region21: #{simple_rnn_forward.1} parent=0 // pred_fallthru
    _
  // Predicated region
  $region22: #{simple_rnn_forward.1} parent=0 // pred_check
    _
  $region23: #{simple_rnn_forward.1} parent=0 // pred_check_branch
    %22 = sbr.rel (0) target = $region25
  $region24: #{simple_rnn_forward.1} parent=0 // pred_region
    _
  $region25: #{simple_rnn_forward.1} parent=0 // pred_fallthru
    _
  %p23 = scmp.eq.s32.totalorder 0, 0
  // Predicated region
  $region26: #{simple_rnn_forward.1} parent=0 // pred_check
    %p24 = pneg %p23
  $region27: #{simple_rnn_forward.1} parent=0 // pred_check_branch
    %26 = sbr.rel (%p24) target = $region29
  $region28: #{simple_rnn_forward.1} parent=0 // pred_region
    %27 = vst [vmem:[#allocation2] sm:$0xff] 0.0
  $region29: #{simple_rnn_forward.1} parent=0 // pred_fallthru
    _
  %v28 = vld [vmem:[%s0] sm:$0xff]
  %v29 = vld [vmem:[%s0 + $0x8] sm:$0xff]
  %v30 = vld [vmem:[%s0 + $0x10] sm:$0xff]
  %v31 = vld [vmem:[%s0 + $0x18] sm:$0xff]
  %v32 = vld [vmem:[%s0 + $0x20] sm:$0xff]
  %v33 = vld [vmem:[%s0 + $0x28] sm:$0xff]
  %v34 = vld [vmem:[%s0 + $0x30] sm:$0xff]
  %v35 = vld [vmem:[%s0 + $0x38] sm:$0xff]
  %v36 = vld [vmem:[%s1] sm:$0xff]
  %v37 = vld [vmem:[%s1 + $0x8] sm:$0xff]
  %v38 = vld [vmem:[%s1 + $0x10] sm:$0xff]
  %v39 = vld [vmem:[%s1 + $0x18] sm:$0xff]
  %v40 = vld [vmem:[%s1 + $0x20] sm:$0xff]
  %v41 = vld [vmem:[%s1 + $0x28] sm:$0xff]
  %v42 = vld [vmem:[%s1 + $0x30] sm:$0xff]
  %v43 = vld [vmem:[%s1 + $0x38] sm:$0xff]
  %v44 = vld [vmem:[%s1 + $0x40] sm:$0xff]
  %v45 = vld [vmem:[%s1 + $0x48] sm:$0xff]
  %v46 = vld [vmem:[%s1 + $0x50] sm:$0xff]
  %v47 = vld [vmem:[%s1 + $0x58] sm:$0xff]
  %v48 = vld [vmem:[%s1 + $0x60] sm:$0xff]
  %v49 = vld [vmem:[%s1 + $0x68] sm:$0xff]
  %v50 = vld [vmem:[%s1 + $0x70] sm:$0xff]
  %v51 = vld [vmem:[%s1 + $0x78] sm:$0xff]
  %v52 = vld [vmem:[%s4] sm:$0x1]
  %v54 = vlaneseq
  %v55 = vshrl.u32 %v54, 7
  %v56 = vsub.s32 0, %v55
  %v57 = vrot.slane %v52, %v56
  %59 = vmatprep.subr.mxu0 0.0
  %60 = vmatpush1.msra.mxu0 %v36
  %61 = vmatprep.subr.mxu0 0.0
  %62 = vmatpush1.msra.mxu0 %v37
  %63 = vmatprep.subr.mxu0 0.0
  %64 = vmatpush1.msra.mxu0 %v38
  %65 = vmatprep.subr.mxu0 0.0
  %66 = vmatpush1.msra.mxu0 %v39
  %67 = vmatprep.subr.mxu0 0.0
  %68 = vmatpush1.msra.mxu0 %v40
  %69 = vmatprep.subr.mxu0 0.0
  %70 = vmatpush1.msra.mxu0 %v41
  %71 = vmatprep.subr.mxu0 0.0
  %72 = vmatpush1.msra.mxu0 %v42
  %73 = vmatprep.subr.mxu0 0.0
  %74 = vmatpush1.msra.mxu0 %v43
  %75 = vmatprep.subr.mxu0 0.0
  %76 = vmatpush1.msra.mxu0 %v44
  %77 = vmatprep.subr.mxu0 0.0
  %78 = vmatpush1.msra.mxu0 %v45
  %79 = vmatprep.subr.mxu0 0.0
  %80 = vmatpush1.msra.mxu0 %v46
  %81 = vmatprep.subr.mxu0 0.0
  %82 = vmatpush1.msra.mxu0 %v47
  %83 = vmatprep.subr.mxu0 0.0
  %84 = vmatpush1.msra.mxu0 %v48
  %85 = vmatprep.subr.mxu0 0.0
  %86 = vmatpush1.msra.mxu0 %v49
  %87 = vmatprep.subr.mxu0 0.0
  %88 = vmatpush1.msra.mxu0 %v50
  %89 = vmatprep.subr.mxu0 0.0
  %90 = vmatpush1.msra.mxu0 %v51
  %91 = vmatprep.subr.mxu0 0.0
  %92 = vmatpush1.msra.mxu0 0.0
  %93 = vmatprep.subr.mxu0 0.0
  %94 = vmatpush1.msra.mxu0 0.0
  %95 = vmatprep.subr.mxu0 0.0
  %96 = vmatpush1.msra.mxu0 0.0
  %97 = vmatprep.subr.mxu0 0.0
  %98 = vmatpush1.msra.mxu0 0.0
  %99 = vmatprep.subr.mxu0 0.0
  %100 = vmatpush1.msra.mxu0 0.0
  %101 = vmatprep.subr.mxu0 0.0
  %102 = vmatpush1.msra.mxu0 0.0
  %103 = vmatprep.subr.mxu0 0.0
  %104 = vmatpush1.msra.mxu0 0.0
  %105 = vmatprep.subr.mxu0 0.0
  %106 = vmatpush1.msra.mxu0 0.0
  %107 = vmatprep.subr.mxu0 0.0
  %108 = vmatpush1.msra.mxu0 0.0
  %109 = vmatprep.subr.mxu0 0.0
  %110 = vmatpush1.msra.mxu0 0.0
  %111 = vmatprep.subr.mxu0 0.0
  %112 = vmatpush1.msra.mxu0 0.0
  %113 = vmatprep.subr.mxu0 0.0
  %114 = vmatpush1.msra.mxu0 0.0
  %115 = vmatprep.subr.mxu0 0.0
  %116 = vmatpush1.msra.mxu0 0.0
  %117 = vmatprep.subr.mxu0 0.0
  %118 = vmatpush1.msra.mxu0 0.0
  %119 = vmatprep.subr.mxu0 0.0
  %120 = vmatpush1.msra.mxu0 0.0
  %121 = vmatprep.subr.mxu0 0.0
  %122 = vmatpush1.msra.mxu0 0.0
  %123 = vmatprep.mubr.f32.mxu0 0.0
  %124 = vmatmul.mubr.f32.gmra.mrb[0].mxu0 %v28
  %v125 = vpop.f32.mrb[0].mxu0
  %v126 = vadd.f32 %v57, %v125
  %v127 = vpop.f32.mrb[0].mxu0
  %128 = vmatprep.mubr.f32.mxu0 0.0
  %129 = vmatmul.mubr.f32.gmra.mrb[0].mxu0 %v29
  %v130 = vpop.f32.mrb[0].mxu0
  %v131 = vadd.f32 %v57, %v130
  %v132 = vpop.f32.mrb[0].mxu0
  %133 = vmatprep.mubr.f32.mxu0 0.0
  %134 = vmatmul.mubr.f32.gmra.mrb[0].mxu0 %v30
  %v135 = vpop.f32.mrb[0].mxu0
  %v136 = vadd.f32 %v57, %v135
  %v137 = vpop.f32.mrb[0].mxu0
  %138 = vmatprep.mubr.f32.mxu0 0.0
  %139 = vmatmul.mubr.f32.gmra.mrb[0].mxu0 %v31
  %v140 = vpop.f32.mrb[0].mxu0
  %v141 = vadd.f32 %v57, %v140
  %v142 = vpop.f32.mrb[0].mxu0
  %143 = vmatprep.mubr.f32.mxu0 0.0
  %144 = vmatmul.mubr.f32.gmra.mrb[0].mxu0 %v32
  %v145 = vpop.f32.mrb[0].mxu0
  %v146 = vadd.f32 %v57, %v145
  %v147 = vpop.f32.mrb[0].mxu0
  %148 = vmatprep.mubr.f32.mxu0 0.0
  %149 = vmatmul.mubr.f32.gmra.mrb[0].mxu0 %v33
  %v150 = vpop.f32.mrb[0].mxu0
  %v151 = vadd.f32 %v57, %v150
  %v152 = vpop.f32.mrb[0].mxu0
  %153 = vmatprep.mubr.f32.mxu0 0.0
  %154 = vmatmul.mubr.f32.gmra.mrb[0].mxu0 %v34
  %v155 = vpop.f32.mrb[0].mxu0
  %v156 = vadd.f32 %v57, %v155
  %v157 = vpop.f32.mrb[0].mxu0
  %158 = vmatprep.mubr.f32.mxu0 0.0
  %159 = vmatmul.mubr.f32.gmra.mrb[0].mxu0 %v35
  %v160 = vpop.f32.mrb[0].mxu0
  %v161 = vadd.f32 %v57, %v160
  %v162 = vpop.f32.mrb[0].mxu0
  %163 = vdwg.mxu0
  %164 = vst [vmem:[#allocation3] sm:$0xff] %v126
  %165 = vst [vmem:[#allocation3 + $0x8] sm:$0xff] %v131
  %166 = vst [vmem:[#allocation3 + $0x10] sm:$0xff] %v136
  %167 = vst [vmem:[#allocation3 + $0x18] sm:$0xff] %v141
  %168 = vst [vmem:[#allocation3 + $0x20] sm:$0xff] %v146
  %169 = vst [vmem:[#allocation3 + $0x28] sm:$0xff] %v151
  %170 = vst [vmem:[#allocation3 + $0x30] sm:$0xff] %v156
  %171 = vst [vmem:[#allocation3 + $0x38] sm:$0xff] %v161
  %v172 = vld [vmem:[%s2] sm:$0xff]
  %v173 = vld [vmem:[%s2 + $0x8] sm:$0xff]
  %v174 = vld [vmem:[%s2 + $0x10] sm:$0xff]
  %v175 = vld [vmem:[%s2 + $0x18] sm:$0xff]
  %v176 = vld [vmem:[%s2 + $0x20] sm:$0xff]
  %v177 = vld [vmem:[%s2 + $0x28] sm:$0xff]
  %v178 = vld [vmem:[%s2 + $0x30] sm:$0xff]
  %v179 = vld [vmem:[%s2 + $0x38] sm:$0xff]
  %v180 = vld [vmem:[%s2 + $0x40] sm:$0xff]
  %v181 = vld [vmem:[%s2 + $0x48] sm:$0xff]
  %v182 = vld [vmem:[%s2 + $0x50] sm:$0xff]
  %v183 = vld [vmem:[%s2 + $0x58] sm:$0xff]
  %v184 = vld [vmem:[%s2 + $0x60] sm:$0xff]
  %v185 = vld [vmem:[%s2 + $0x68] sm:$0xff]
  %v186 = vld [vmem:[%s2 + $0x70] sm:$0xff]
  %v187 = vld [vmem:[%s2 + $0x78] sm:$0xff]
  %v188 = vld [vmem:[#allocation2] sm:$0xff]
  %189 = vmatprep.subr.mxu0 0.0
  %190 = vmatpush1.msra.mxu0 %v172
  %191 = vmatprep.subr.mxu0 0.0
  %192 = vmatpush1.msra.mxu0 %v173
  %193 = vmatprep.subr.mxu0 0.0
  %194 = vmatpush1.msra.mxu0 %v174
  %195 = vmatprep.subr.mxu0 0.0
  %196 = vmatpush1.msra.mxu0 %v175
  %197 = vmatprep.subr.mxu0 0.0
  %198 = vmatpush1.msra.mxu0 %v176
  %199 = vmatprep.subr.mxu0 0.0
  %200 = vmatpush1.msra.mxu0 %v177
  %201 = vmatprep.subr.mxu0 0.0
  %202 = vmatpush1.msra.mxu0 %v178
  %203 = vmatprep.subr.mxu0 0.0
  %204 = vmatpush1.msra.mxu0 %v179
  %205 = vmatprep.subr.mxu0 0.0
  %206 = vmatpush1.msra.mxu0 %v180
  %207 = vmatprep.subr.mxu0 0.0
  %208 = vmatpush1.msra.mxu0 %v181
  %209 = vmatprep.subr.mxu0 0.0
  %210 = vmatpush1.msra.mxu0 %v182
  %211 = vmatprep.subr.mxu0 0.0
  %212 = vmatpush1.msra.mxu0 %v183
  %213 = vmatprep.subr.mxu0 0.0
  %214 = vmatpush1.msra.mxu0 %v184
  %215 = vmatprep.subr.mxu0 0.0
  %216 = vmatpush1.msra.mxu0 %v185
  %217 = vmatprep.subr.mxu0 0.0
  %218 = vmatpush1.msra.mxu0 %v186
  %219 = vmatprep.subr.mxu0 0.0
  %220 = vmatpush1.msra.mxu0 %v187
  %221 = vmatprep.subr.mxu0 0.0
  %222 = vmatpush1.msra.mxu0 0.0
  %223 = vmatprep.subr.mxu0 0.0
  %224 = vmatpush1.msra.mxu0 0.0
  %225 = vmatprep.subr.mxu0 0.0
  %226 = vmatpush1.msra.mxu0 0.0
  %227 = vmatprep.subr.mxu0 0.0
  %228 = vmatpush1.msra.mxu0 0.0
  %229 = vmatprep.subr.mxu0 0.0
  %230 = vmatpush1.msra.mxu0 0.0
  %231 = vmatprep.subr.mxu0 0.0
  %232 = vmatpush1.msra.mxu0 0.0
  %233 = vmatprep.subr.mxu0 0.0
  %234 = vmatpush1.msra.mxu0 0.0
  %235 = vmatprep.subr.mxu0 0.0
  %236 = vmatpush1.msra.mxu0 0.0
  %237 = vmatprep.subr.mxu0 0.0
  %238 = vmatpush1.msra.mxu0 0.0
  %239 = vmatprep.subr.mxu0 0.0
  %240 = vmatpush1.msra.mxu0 0.0
  %241 = vmatprep.subr.mxu0 0.0
  %242 = vmatpush1.msra.mxu0 0.0
  %243 = vmatprep.subr.mxu0 0.0
  %244 = vmatpush1.msra.mxu0 0.0
  %245 = vmatprep.subr.mxu0 0.0
  %246 = vmatpush1.msra.mxu0 0.0
  %247 = vmatprep.subr.mxu0 0.0
  %248 = vmatpush1.msra.mxu0 0.0
  %249 = vmatprep.subr.mxu0 0.0
  %250 = vmatpush1.msra.mxu0 0.0
  %251 = vmatprep.subr.mxu0 0.0
  %252 = vmatpush1.msra.mxu0 0.0
  %253 = vmatprep.mubr.f32.mxu0 0.0
  %254 = vmatmul.mubr.f32.gmra.mrb[0].mxu0 %v188
  %v255 = vpop.f32.mrb[0].mxu0
  %v256 = vadd.f32 0.0, %v255
  %v257 = vpop.f32.mrb[0].mxu0
  %258 = vdwg.mxu0
  %v259 = vld [vmem:[#allocation3] sm:$0x1]
  %v260 = vld [vmem:[#allocation3 + $0x8] sm:$0x1]
  %v261 = vld [vmem:[#allocation3 + $0x10] sm:$0x1]
  %v262 = vld [vmem:[#allocation3 + $0x18] sm:$0x1]
  %v263 = vld [vmem:[#allocation3 + $0x20] sm:$0x1]
  %v264 = vld [vmem:[#allocation3 + $0x28] sm:$0x1]
  %v265 = vld [vmem:[#allocation3 + $0x30] sm:$0x1]
  %v266 = vld [vmem:[#allocation3 + $0x38] sm:$0x1]
  %v268 = vrot.slane %v256, 1
  %v269 = vrot.slane %v256, 2
  %v270 = vrot.slane %v256, 3
  %v271 = vrot.slane %v256, 4
  %v272 = vrot.slane %v256, 5
  %v273 = vrot.slane %v256, 6
  %v274 = vrot.slane %v256, 7
  %v283 = vadd.f32 %v259, %v256
  %v284 = vadd.f32 %v260, %v268
  %v285 = vadd.f32 %v261, %v269
  %v286 = vadd.f32 %v262, %v270
  %v287 = vadd.f32 %v263, %v271
  %v288 = vadd.f32 %v264, %v272
  %v289 = vadd.f32 %v265, %v273
  %v290 = vadd.f32 %v266, %v274
  %v291 = vtanh.pop %v283
  %v292 = vtanh.pop %v284
  %v293 = vtanh.pop %v285
  %v294 = vtanh.pop %v286
  %v295 = vtanh.pop %v287
  %v296 = vtanh.pop %v288
  %v297 = vtanh.pop %v289
  %v298 = vtanh.pop %v290
  %299 = vst [vmem:[#allocation3] sm:$0x1] %v291
  %300 = vst [vmem:[#allocation3 + $0x8] sm:$0x1] %v292
  %301 = vst [vmem:[#allocation3 + $0x10] sm:$0x1] %v293
  %302 = vst [vmem:[#allocation3 + $0x18] sm:$0x1] %v294
  %303 = vst [vmem:[#allocation3 + $0x20] sm:$0x1] %v295
  %304 = vst [vmem:[#allocation3 + $0x28] sm:$0x1] %v296
  %305 = vst [vmem:[#allocation3 + $0x30] sm:$0x1] %v297
  %306 = vst [vmem:[#allocation3 + $0x38] sm:$0x1] %v298
  %v315 = vrot.slane %v292, 7
  %vm316 = vcmask 1041409
  %v317 = vsel %vm316, %v315, %v291
  %v318 = vrot.slane %v293, 6
  %vm319 = vcmask 1042434
  %v320 = vsel %vm319, %v318, %v317
  %v321 = vrot.slane %v294, 5
  %vm322 = vcmask 1043459
  %v323 = vsel %vm322, %v321, %v320
  %v324 = vrot.slane %v295, 4
  %vm325 = vcmask 1044484
  %v326 = vsel %vm325, %v324, %v323
  %v327 = vrot.slane %v296, 3
  %vm328 = vcmask 1045509
  %v329 = vsel %vm328, %v327, %v326
  %v330 = vrot.slane %v297, 2
  %vm331 = vcmask 1046534
  %v332 = vsel %vm331, %v330, %v329
  %v333 = vrot.slane %v298, 1
  %vm334 = vcmask 1047559
  %v335 = vsel %vm334, %v333, %v332
  %337 = vmatprep.subr.mxu0 0.0
  %338 = vmatpush1.msra.mxu0 %v172
  %339 = vmatprep.subr.mxu0 0.0
  %340 = vmatpush1.msra.mxu0 %v173
  %341 = vmatprep.subr.mxu0 0.0
  %342 = vmatpush1.msra.mxu0 %v174
  %343 = vmatprep.subr.mxu0 0.0
  %344 = vmatpush1.msra.mxu0 %v175
  %345 = vmatprep.subr.mxu0 0.0
  %346 = vmatpush1.msra.mxu0 %v176
  %347 = vmatprep.subr.mxu0 0.0
  %348 = vmatpush1.msra.mxu0 %v177
  %349 = vmatprep.subr.mxu0 0.0
  %350 = vmatpush1.msra.mxu0 %v178
  %351 = vmatprep.subr.mxu0 0.0
  %352 = vmatpush1.msra.mxu0 %v179
  %353 = vmatprep.subr.mxu0 0.0
  %354 = vmatpush1.msra.mxu0 %v180
  %355 = vmatprep.subr.mxu0 0.0
  %356 = vmatpush1.msra.mxu0 %v181
  %357 = vmatprep.subr.mxu0 0.0
  %358 = vmatpush1.msra.mxu0 %v182
  %359 = vmatprep.subr.mxu0 0.0
  %360 = vmatpush1.msra.mxu0 %v183
  %361 = vmatprep.subr.mxu0 0.0
  %362 = vmatpush1.msra.mxu0 %v184
  %363 = vmatprep.subr.mxu0 0.0
  %364 = vmatpush1.msra.mxu0 %v185
  %365 = vmatprep.subr.mxu0 0.0
  %366 = vmatpush1.msra.mxu0 %v186
  %367 = vmatprep.subr.mxu0 0.0
  %368 = vmatpush1.msra.mxu0 %v187
  %369 = vmatprep.subr.mxu0 0.0
  %370 = vmatpush1.msra.mxu0 0.0
  %371 = vmatprep.subr.mxu0 0.0
  %372 = vmatpush1.msra.mxu0 0.0
  %373 = vmatprep.subr.mxu0 0.0
  %374 = vmatpush1.msra.mxu0 0.0
  %375 = vmatprep.subr.mxu0 0.0
  %376 = vmatpush1.msra.mxu0 0.0
  %377 = vmatprep.subr.mxu0 0.0
  %378 = vmatpush1.msra.mxu0 0.0
  %379 = vmatprep.subr.mxu0 0.0
  %380 = vmatpush1.msra.mxu0 0.0
  %381 = vmatprep.subr.mxu0 0.0
  %382 = vmatpush1.msra.mxu0 0.0
  %383 = vmatprep.subr.mxu0 0.0
  %384 = vmatpush1.msra.mxu0 0.0
  %385 = vmatprep.subr.mxu0 0.0
  %386 = vmatpush1.msra.mxu0 0.0
  %387 = vmatprep.subr.mxu0 0.0
  %388 = vmatpush1.msra.mxu0 0.0
  %389 = vmatprep.subr.mxu0 0.0
  %390 = vmatpush1.msra.mxu0 0.0
  %391 = vmatprep.subr.mxu0 0.0
  %392 = vmatpush1.msra.mxu0 0.0
  %393 = vmatprep.subr.mxu0 0.0
  %394 = vmatpush1.msra.mxu0 0.0
  %395 = vmatprep.subr.mxu0 0.0
  %396 = vmatpush1.msra.mxu0 0.0
  %397 = vmatprep.subr.mxu0 0.0
  %398 = vmatpush1.msra.mxu0 0.0
  %399 = vmatprep.subr.mxu0 0.0
  %400 = vmatpush1.msra.mxu0 0.0
  %401 = vmatprep.mubr.f32.mxu0 0.0
  %402 = vmatmul.mubr.f32.gmra.mrb[0].mxu0 %v335
  %v403 = vpop.f32.mrb[0].mxu0
  %v404 = vadd.f32 0.0, %v403
  %v405 = vpop.f32.mrb[0].mxu0
  %406 = vdwg.mxu0
  %v407 = vld [vmem:[#allocation3 + $0x1] sm:$0x1]
  %v408 = vld [vmem:[#allocation3 + $0x9] sm:$0x1]
  %v409 = vld [vmem:[#allocation3 + $0x11] sm:$0x1]
  %v410 = vld [vmem:[#allocation3 + $0x19] sm:$0x1]
  %v411 = vld [vmem:[#allocation3 + $0x21] sm:$0x1]
  %v412 = vld [vmem:[#allocation3 + $0x29] sm:$0x1]
  %v413 = vld [vmem:[#allocation3 + $0x31] sm:$0x1]
  %v414 = vld [vmem:[#allocation3 + $0x39] sm:$0x1]
  %v416 = vrot.slane %v404, 1
  %v417 = vrot.slane %v404, 2
  %v418 = vrot.slane %v404, 3
  %v419 = vrot.slane %v404, 4
  %v420 = vrot.slane %v404, 5
  %v421 = vrot.slane %v404, 6
  %v422 = vrot.slane %v404, 7
  %v431 = vadd.f32 %v407, %v404
  %v432 = vadd.f32 %v408, %v416
  %v433 = vadd.f32 %v409, %v417
  %v434 = vadd.f32 %v410, %v418
  %v435 = vadd.f32 %v411, %v419
  %v436 = vadd.f32 %v412, %v420
  %v437 = vadd.f32 %v413, %v421
  %v438 = vadd.f32 %v414, %v422
  %v439 = vtanh.pop %v431
  %v440 = vtanh.pop %v432
  %v441 = vtanh.pop %v433
  %v442 = vtanh.pop %v434
  %v443 = vtanh.pop %v435
  %v444 = vtanh.pop %v436
  %v445 = vtanh.pop %v437
  %v446 = vtanh.pop %v438
  %447 = vst [vmem:[#allocation3 + $0x1] sm:$0x1] %v439
  %448 = vst [vmem:[#allocation3 + $0x9] sm:$0x1] %v440
  %449 = vst [vmem:[#allocation3 + $0x11] sm:$0x1] %v441
  %450 = vst [vmem:[#allocation3 + $0x19] sm:$0x1] %v442
  %451 = vst [vmem:[#allocation3 + $0x21] sm:$0x1] %v443
  %452 = vst [vmem:[#allocation3 + $0x29] sm:$0x1] %v444
  %453 = vst [vmem:[#allocation3 + $0x31] sm:$0x1] %v445
  %454 = vst [vmem:[#allocation3 + $0x39] sm:$0x1] %v446
  %v463 = vrot.slane %v440, 7
  %v464 = vsel %vm316, %v463, %v439
  %v465 = vrot.slane %v441, 6
  %v466 = vsel %vm319, %v465, %v464
  %v467 = vrot.slane %v442, 5
  %v468 = vsel %vm322, %v467, %v466
  %v469 = vrot.slane %v443, 4
  %v470 = vsel %vm325, %v469, %v468
  %v471 = vrot.slane %v444, 3
  %v472 = vsel %vm328, %v471, %v470
  %v473 = vrot.slane %v445, 2
  %v474 = vsel %vm331, %v473, %v472
  %v475 = vrot.slane %v446, 1
  %v476 = vsel %vm334, %v475, %v474
  %478 = vmatprep.subr.mxu0 0.0
  %479 = vmatpush1.msra.mxu0 %v172
  %480 = vmatprep.subr.mxu0 0.0
  %481 = vmatpush1.msra.mxu0 %v173
  %482 = vmatprep.subr.mxu0 0.0
  %483 = vmatpush1.msra.mxu0 %v174
  %484 = vmatprep.subr.mxu0 0.0
  %485 = vmatpush1.msra.mxu0 %v175
  %486 = vmatprep.subr.mxu0 0.0
  %487 = vmatpush1.msra.mxu0 %v176
  %488 = vmatprep.subr.mxu0 0.0
  %489 = vmatpush1.msra.mxu0 %v177
  %490 = vmatprep.subr.mxu0 0.0
  %491 = vmatpush1.msra.mxu0 %v178
  %492 = vmatprep.subr.mxu0 0.0
  %493 = vmatpush1.msra.mxu0 %v179
  %494 = vmatprep.subr.mxu0 0.0
  %495 = vmatpush1.msra.mxu0 %v180
  %496 = vmatprep.subr.mxu0 0.0
  %497 = vmatpush1.msra.mxu0 %v181
  %498 = vmatprep.subr.mxu0 0.0
  %499 = vmatpush1.msra.mxu0 %v182
  %500 = vmatprep.subr.mxu0 0.0
  %501 = vmatpush1.msra.mxu0 %v183
  %502 = vmatprep.subr.mxu0 0.0
  %503 = vmatpush1.msra.mxu0 %v184
  %504 = vmatprep.subr.mxu0 0.0
  %505 = vmatpush1.msra.mxu0 %v185
  %506 = vmatprep.subr.mxu0 0.0
  %507 = vmatpush1.msra.mxu0 %v186
  %508 = vmatprep.subr.mxu0 0.0
  %509 = vmatpush1.msra.mxu0 %v187
  %510 = vmatprep.subr.mxu0 0.0
  %511 = vmatpush1.msra.mxu0 0.0
  %512 = vmatprep.subr.mxu0 0.0
  %513 = vmatpush1.msra.mxu0 0.0
  %514 = vmatprep.subr.mxu0 0.0
  %515 = vmatpush1.msra.mxu0 0.0
  %516 = vmatprep.subr.mxu0 0.0
  %517 = vmatpush1.msra.mxu0 0.0
  %518 = vmatprep.subr.mxu0 0.0
  %519 = vmatpush1.msra.mxu0 0.0
  %520 = vmatprep.subr.mxu0 0.0
  %521 = vmatpush1.msra.mxu0 0.0
  %522 = vmatprep.subr.mxu0 0.0
  %523 = vmatpush1.msra.mxu0 0.0
  %524 = vmatprep.subr.mxu0 0.0
  %525 = vmatpush1.msra.mxu0 0.0
  %526 = vmatprep.subr.mxu0 0.0
  %527 = vmatpush1.msra.mxu0 0.0
  %528 = vmatprep.subr.mxu0 0.0
  %529 = vmatpush1.msra.mxu0 0.0
  %530 = vmatprep.subr.mxu0 0.0
  %531 = vmatpush1.msra.mxu0 0.0
  %532 = vmatprep.subr.mxu0 0.0
  %533 = vmatpush1.msra.mxu0 0.0
  %534 = vmatprep.subr.mxu0 0.0
  %535 = vmatpush1.msra.mxu0 0.0
  %536 = vmatprep.subr.mxu0 0.0
  %537 = vmatpush1.msra.mxu0 0.0
  %538 = vmatprep.subr.mxu0 0.0
  %539 = vmatpush1.msra.mxu0 0.0
  %540 = vmatprep.subr.mxu0 0.0
  %541 = vmatpush1.msra.mxu0 0.0
  %542 = vmatprep.mubr.f32.mxu0 0.0
  %543 = vmatmul.mubr.f32.gmra.mrb[0].mxu0 %v476
  %v544 = vpop.f32.mrb[0].mxu0
  %v545 = vadd.f32 0.0, %v544
  %v546 = vpop.f32.mrb[0].mxu0
  %547 = vdwg.mxu0
  %v548 = vld [vmem:[#allocation3 + $0x2] sm:$0x1]
  %v549 = vld [vmem:[#allocation3 + $0xa] sm:$0x1]
  %v550 = vld [vmem:[#allocation3 + $0x12] sm:$0x1]
  %v551 = vld [vmem:[#allocation3 + $0x1a] sm:$0x1]
  %v552 = vld [vmem:[#allocation3 + $0x22] sm:$0x1]
  %v553 = vld [vmem:[#allocation3 + $0x2a] sm:$0x1]
  %v554 = vld [vmem:[#allocation3 + $0x32] sm:$0x1]
  %v555 = vld [vmem:[#allocation3 + $0x3a] sm:$0x1]
  %v557 = vrot.slane %v545, 1
  %v558 = vrot.slane %v545, 2
  %v559 = vrot.slane %v545, 3
  %v560 = vrot.slane %v545, 4
  %v561 = vrot.slane %v545, 5
  %v562 = vrot.slane %v545, 6
  %v563 = vrot.slane %v545, 7
  %v572 = vadd.f32 %v548, %v545
  %v573 = vadd.f32 %v549, %v557
  %v574 = vadd.f32 %v550, %v558
  %v575 = vadd.f32 %v551, %v559
  %v576 = vadd.f32 %v552, %v560
  %v577 = vadd.f32 %v553, %v561
  %v578 = vadd.f32 %v554, %v562
  %v579 = vadd.f32 %v555, %v563
  %v580 = vtanh.pop %v572
  %v581 = vtanh.pop %v573
  %v582 = vtanh.pop %v574
  %v583 = vtanh.pop %v575
  %v584 = vtanh.pop %v576
  %v585 = vtanh.pop %v577
  %v586 = vtanh.pop %v578
  %v587 = vtanh.pop %v579
  %588 = vst [vmem:[#allocation3 + $0x2] sm:$0x1] %v580
  %589 = vst [vmem:[#allocation3 + $0xa] sm:$0x1] %v581
  %590 = vst [vmem:[#allocation3 + $0x12] sm:$0x1] %v582
  %591 = vst [vmem:[#allocation3 + $0x1a] sm:$0x1] %v583
  %592 = vst [vmem:[#allocation3 + $0x22] sm:$0x1] %v584
  %593 = vst [vmem:[#allocation3 + $0x2a] sm:$0x1] %v585
  %594 = vst [vmem:[#allocation3 + $0x32] sm:$0x1] %v586
  %595 = vst [vmem:[#allocation3 + $0x3a] sm:$0x1] %v587
  %v604 = vrot.slane %v581, 7
  %v605 = vsel %vm316, %v604, %v580
  %v606 = vrot.slane %v582, 6
  %v607 = vsel %vm319, %v606, %v605
  %v608 = vrot.slane %v583, 5
  %v609 = vsel %vm322, %v608, %v607
  %v610 = vrot.slane %v584, 4
  %v611 = vsel %vm325, %v610, %v609
  %v612 = vrot.slane %v585, 3
  %v613 = vsel %vm328, %v612, %v611
  %v614 = vrot.slane %v586, 2
  %v615 = vsel %vm331, %v614, %v613
  %v616 = vrot.slane %v587, 1
  %v617 = vsel %vm334, %v616, %v615
  %619 = vmatprep.subr.mxu0 0.0
  %620 = vmatpush1.msra.mxu0 %v172
  %621 = vmatprep.subr.mxu0 0.0
  %622 = vmatpush1.msra.mxu0 %v173
  %623 = vmatprep.subr.mxu0 0.0
  %624 = vmatpush1.msra.mxu0 %v174
  %625 = vmatprep.subr.mxu0 0.0
  %626 = vmatpush1.msra.mxu0 %v175
  %627 = vmatprep.subr.mxu0 0.0
  %628 = vmatpush1.msra.mxu0 %v176
  %629 = vmatprep.subr.mxu0 0.0
  %630 = vmatpush1.msra.mxu0 %v177
  %631 = vmatprep.subr.mxu0 0.0
  %632 = vmatpush1.msra.mxu0 %v178
  %633 = vmatprep.subr.mxu0 0.0
  %634 = vmatpush1.msra.mxu0 %v179
  %635 = vmatprep.subr.mxu0 0.0
  %636 = vmatpush1.msra.mxu0 %v180
  %637 = vmatprep.subr.mxu0 0.0
  %638 = vmatpush1.msra.mxu0 %v181
  %639 = vmatprep.subr.mxu0 0.0
  %640 = vmatpush1.msra.mxu0 %v182
  %641 = vmatprep.subr.mxu0 0.0
  %642 = vmatpush1.msra.mxu0 %v183
  %643 = vmatprep.subr.mxu0 0.0
  %644 = vmatpush1.msra.mxu0 %v184
  %645 = vmatprep.subr.mxu0 0.0
  %646 = vmatpush1.msra.mxu0 %v185
  %647 = vmatprep.subr.mxu0 0.0
  %648 = vmatpush1.msra.mxu0 %v186
  %649 = vmatprep.subr.mxu0 0.0
  %650 = vmatpush1.msra.mxu0 %v187
  %651 = vmatprep.subr.mxu0 0.0
  %652 = vmatpush1.msra.mxu0 0.0
  %653 = vmatprep.subr.mxu0 0.0
  %654 = vmatpush1.msra.mxu0 0.0
  %655 = vmatprep.subr.mxu0 0.0
  %656 = vmatpush1.msra.mxu0 0.0
  %657 = vmatprep.subr.mxu0 0.0
  %658 = vmatpush1.msra.mxu0 0.0
  %659 = vmatprep.subr.mxu0 0.0
  %660 = vmatpush1.msra.mxu0 0.0
  %661 = vmatprep.subr.mxu0 0.0
  %662 = vmatpush1.msra.mxu0 0.0
  %663 = vmatprep.subr.mxu0 0.0
  %664 = vmatpush1.msra.mxu0 0.0
  %665 = vmatprep.subr.mxu0 0.0
  %666 = vmatpush1.msra.mxu0 0.0
  %667 = vmatprep.subr.mxu0 0.0
  %668 = vmatpush1.msra.mxu0 0.0
  %669 = vmatprep.subr.mxu0 0.0
  %670 = vmatpush1.msra.mxu0 0.0
  %671 = vmatprep.subr.mxu0 0.0
  %672 = vmatpush1.msra.mxu0 0.0
  %673 = vmatprep.subr.mxu0 0.0
  %674 = vmatpush1.msra.mxu0 0.0
  %675 = vmatprep.subr.mxu0 0.0
  %676 = vmatpush1.msra.mxu0 0.0
  %677 = vmatprep.subr.mxu0 0.0
  %678 = vmatpush1.msra.mxu0 0.0
  %679 = vmatprep.subr.mxu0 0.0
  %680 = vmatpush1.msra.mxu0 0.0
  %681 = vmatprep.subr.mxu0 0.0
  %682 = vmatpush1.msra.mxu0 0.0
  %683 = vmatprep.mubr.f32.mxu0 0.0
  %684 = vmatmul.mubr.f32.gmra.mrb[0].mxu0 %v617
  %v685 = vpop.f32.mrb[0].mxu0
  %v686 = vadd.f32 0.0, %v685
  %v687 = vpop.f32.mrb[0].mxu0
  %688 = vdwg.mxu0
  %v689 = vld [vmem:[#allocation3 + $0x3] sm:$0x1]
  %v690 = vld [vmem:[#allocation3 + $0xb] sm:$0x1]
  %v691 = vld [vmem:[#allocation3 + $0x13] sm:$0x1]
  %v692 = vld [vmem:[#allocation3 + $0x1b] sm:$0x1]
  %v693 = vld [vmem:[#allocation3 + $0x23] sm:$0x1]
  %v694 = vld [vmem:[#allocation3 + $0x2b] sm:$0x1]
  %v695 = vld [vmem:[#allocation3 + $0x33] sm:$0x1]
  %v696 = vld [vmem:[#allocation3 + $0x3b] sm:$0x1]
  %v698 = vrot.slane %v686, 1
  %v699 = vrot.slane %v686, 2
  %v700 = vrot.slane %v686, 3
  %v701 = vrot.slane %v686, 4
  %v702 = vrot.slane %v686, 5
  %v703 = vrot.slane %v686, 6
  %v704 = vrot.slane %v686, 7
  %v713 = vadd.f32 %v689, %v686
  %v714 = vadd.f32 %v690, %v698
  %v715 = vadd.f32 %v691, %v699
  %v716 = vadd.f32 %v692, %v700
  %v717 = vadd.f32 %v693, %v701
  %v718 = vadd.f32 %v694, %v702
  %v719 = vadd.f32 %v695, %v703
  %v720 = vadd.f32 %v696, %v704
  %v721 = vtanh.pop %v713
  %v722 = vtanh.pop %v714
  %v723 = vtanh.pop %v715
  %v724 = vtanh.pop %v716
  %v725 = vtanh.pop %v717
  %v726 = vtanh.pop %v718
  %v727 = vtanh.pop %v719
  %v728 = vtanh.pop %v720
  %729 = vst [vmem:[#allocation3 + $0x3] sm:$0x1] %v721
  %730 = vst [vmem:[#allocation3 + $0xb] sm:$0x1] %v722
  %731 = vst [vmem:[#allocation3 + $0x13] sm:$0x1] %v723
  %732 = vst [vmem:[#allocation3 + $0x1b] sm:$0x1] %v724
  %733 = vst [vmem:[#allocation3 + $0x23] sm:$0x1] %v725
  %734 = vst [vmem:[#allocation3 + $0x2b] sm:$0x1] %v726
  %735 = vst [vmem:[#allocation3 + $0x33] sm:$0x1] %v727
  %736 = vst [vmem:[#allocation3 + $0x3b] sm:$0x1] %v728
  %v745 = vrot.slane %v722, 7
  %v746 = vsel %vm316, %v745, %v721
  %v747 = vrot.slane %v723, 6
  %v748 = vsel %vm319, %v747, %v746
  %v749 = vrot.slane %v724, 5
  %v750 = vsel %vm322, %v749, %v748
  %v751 = vrot.slane %v725, 4
  %v752 = vsel %vm325, %v751, %v750
  %v753 = vrot.slane %v726, 3
  %v754 = vsel %vm328, %v753, %v752
  %v755 = vrot.slane %v727, 2
  %v756 = vsel %vm331, %v755, %v754
  %v757 = vrot.slane %v728, 1
  %v758 = vsel %vm334, %v757, %v756
  %760 = vmatprep.subr.mxu0 0.0
  %761 = vmatpush1.msra.mxu0 %v172
  %762 = vmatprep.subr.mxu0 0.0
  %763 = vmatpush1.msra.mxu0 %v173
  %764 = vmatprep.subr.mxu0 0.0
  %765 = vmatpush1.msra.mxu0 %v174
  %766 = vmatprep.subr.mxu0 0.0
  %767 = vmatpush1.msra.mxu0 %v175
  %768 = vmatprep.subr.mxu0 0.0
  %769 = vmatpush1.msra.mxu0 %v176
  %770 = vmatprep.subr.mxu0 0.0
  %771 = vmatpush1.msra.mxu0 %v177
  %772 = vmatprep.subr.mxu0 0.0
  %773 = vmatpush1.msra.mxu0 %v178
  %774 = vmatprep.subr.mxu0 0.0
  %775 = vmatpush1.msra.mxu0 %v179
  %776 = vmatprep.subr.mxu0 0.0
  %777 = vmatpush1.msra.mxu0 %v180
  %778 = vmatprep.subr.mxu0 0.0
  %779 = vmatpush1.msra.mxu0 %v181
  %780 = vmatprep.subr.mxu0 0.0
  %781 = vmatpush1.msra.mxu0 %v182
  %782 = vmatprep.subr.mxu0 0.0
  %783 = vmatpush1.msra.mxu0 %v183
  %784 = vmatprep.subr.mxu0 0.0
  %785 = vmatpush1.msra.mxu0 %v184
  %786 = vmatprep.subr.mxu0 0.0
  %787 = vmatpush1.msra.mxu0 %v185
  %788 = vmatprep.subr.mxu0 0.0
  %789 = vmatpush1.msra.mxu0 %v186
  %790 = vmatprep.subr.mxu0 0.0
  %791 = vmatpush1.msra.mxu0 %v187
  %792 = vmatprep.subr.mxu0 0.0
  %793 = vmatpush1.msra.mxu0 0.0
  %794 = vmatprep.subr.mxu0 0.0
  %795 = vmatpush1.msra.mxu0 0.0
  %796 = vmatprep.subr.mxu0 0.0
  %797 = vmatpush1.msra.mxu0 0.0
  %798 = vmatprep.subr.mxu0 0.0
  %799 = vmatpush1.msra.mxu0 0.0
  %800 = vmatprep.subr.mxu0 0.0
  %801 = vmatpush1.msra.mxu0 0.0
  %802 = vmatprep.subr.mxu0 0.0
  %803 = vmatpush1.msra.mxu0 0.0
  %804 = vmatprep.subr.mxu0 0.0
  %805 = vmatpush1.msra.mxu0 0.0
  %806 = vmatprep.subr.mxu0 0.0
  %807 = vmatpush1.msra.mxu0 0.0
  %808 = vmatprep.subr.mxu0 0.0
  %809 = vmatpush1.msra.mxu0 0.0
  %810 = vmatprep.subr.mxu0 0.0
  %811 = vmatpush1.msra.mxu0 0.0
  %812 = vmatprep.subr.mxu0 0.0
  %813 = vmatpush1.msra.mxu0 0.0
  %814 = vmatprep.subr.mxu0 0.0
  %815 = vmatpush1.msra.mxu0 0.0
  %816 = vmatprep.subr.mxu0 0.0
  %817 = vmatpush1.msra.mxu0 0.0
  %818 = vmatprep.subr.mxu0 0.0
  %819 = vmatpush1.msra.mxu0 0.0
  %820 = vmatprep.subr.mxu0 0.0
  %821 = vmatpush1.msra.mxu0 0.0
  %822 = vmatprep.subr.mxu0 0.0
  %823 = vmatpush1.msra.mxu0 0.0
  %824 = vmatprep.mubr.f32.mxu0 0.0
  %825 = vmatmul.mubr.f32.gmra.mrb[0].mxu0 %v758
  %v826 = vpop.f32.mrb[0].mxu0
  %v827 = vadd.f32 0.0, %v826
  %v828 = vpop.f32.mrb[0].mxu0
  %829 = vdwg.mxu0
  %v830 = vld [vmem:[#allocation3 + $0x4] sm:$0x1]
  %v831 = vld [vmem:[#allocation3 + $0xc] sm:$0x1]
  %v832 = vld [vmem:[#allocation3 + $0x14] sm:$0x1]
  %v833 = vld [vmem:[#allocation3 + $0x1c] sm:$0x1]
  %v834 = vld [vmem:[#allocation3 + $0x24] sm:$0x1]
  %v835 = vld [vmem:[#allocation3 + $0x2c] sm:$0x1]
  %v836 = vld [vmem:[#allocation3 + $0x34] sm:$0x1]
  %v837 = vld [vmem:[#allocation3 + $0x3c] sm:$0x1]
  %v839 = vrot.slane %v827, 1
  %v840 = vrot.slane %v827, 2
  %v841 = vrot.slane %v827, 3
  %v842 = vrot.slane %v827, 4
  %v843 = vrot.slane %v827, 5
  %v844 = vrot.slane %v827, 6
  %v845 = vrot.slane %v827, 7
  %v854 = vadd.f32 %v830, %v827
  %v855 = vadd.f32 %v831, %v839
  %v856 = vadd.f32 %v832, %v840
  %v857 = vadd.f32 %v833, %v841
  %v858 = vadd.f32 %v834, %v842
  %v859 = vadd.f32 %v835, %v843
  %v860 = vadd.f32 %v836, %v844
  %v861 = vadd.f32 %v837, %v845
  %v862 = vtanh.pop %v854
  %v863 = vtanh.pop %v855
  %v864 = vtanh.pop %v856
  %v865 = vtanh.pop %v857
  %v866 = vtanh.pop %v858
  %v867 = vtanh.pop %v859
  %v868 = vtanh.pop %v860
  %v869 = vtanh.pop %v861
  %870 = vst [vmem:[#allocation3 + $0x4] sm:$0x1] %v862
  %871 = vst [vmem:[#allocation3 + $0xc] sm:$0x1] %v863
  %872 = vst [vmem:[#allocation3 + $0x14] sm:$0x1] %v864
  %873 = vst [vmem:[#allocation3 + $0x1c] sm:$0x1] %v865
  %874 = vst [vmem:[#allocation3 + $0x24] sm:$0x1] %v866
  %875 = vst [vmem:[#allocation3 + $0x2c] sm:$0x1] %v867
  %876 = vst [vmem:[#allocation3 + $0x34] sm:$0x1] %v868
  %877 = vst [vmem:[#allocation3 + $0x3c] sm:$0x1] %v869
  %v886 = vrot.slane %v863, 7
  %v887 = vsel %vm316, %v886, %v862
  %v888 = vrot.slane %v864, 6
  %v889 = vsel %vm319, %v888, %v887
  %v890 = vrot.slane %v865, 5
  %v891 = vsel %vm322, %v890, %v889
  %v892 = vrot.slane %v866, 4
  %v893 = vsel %vm325, %v892, %v891
  %v894 = vrot.slane %v867, 3
  %v895 = vsel %vm328, %v894, %v893
  %v896 = vrot.slane %v868, 2
  %v897 = vsel %vm331, %v896, %v895
  %v898 = vrot.slane %v869, 1
  %v899 = vsel %vm334, %v898, %v897
  %901 = vmatprep.subr.mxu0 0.0
  %902 = vmatpush1.msra.mxu0 %v172
  %903 = vmatprep.subr.mxu0 0.0
  %904 = vmatpush1.msra.mxu0 %v173
  %905 = vmatprep.subr.mxu0 0.0
  %906 = vmatpush1.msra.mxu0 %v174
  %907 = vmatprep.subr.mxu0 0.0
  %908 = vmatpush1.msra.mxu0 %v175
  %909 = vmatprep.subr.mxu0 0.0
  %910 = vmatpush1.msra.mxu0 %v176
  %911 = vmatprep.subr.mxu0 0.0
  %912 = vmatpush1.msra.mxu0 %v177
  %913 = vmatprep.subr.mxu0 0.0
  %914 = vmatpush1.msra.mxu0 %v178
  %915 = vmatprep.subr.mxu0 0.0
  %916 = vmatpush1.msra.mxu0 %v179
  %917 = vmatprep.subr.mxu0 0.0
  %918 = vmatpush1.msra.mxu0 %v180
  %919 = vmatprep.subr.mxu0 0.0
  %920 = vmatpush1.msra.mxu0 %v181
  %921 = vmatprep.subr.mxu0 0.0
  %922 = vmatpush1.msra.mxu0 %v182
  %923 = vmatprep.subr.mxu0 0.0
  %924 = vmatpush1.msra.mxu0 %v183
  %925 = vmatprep.subr.mxu0 0.0
  %926 = vmatpush1.msra.mxu0 %v184
  %927 = vmatprep.subr.mxu0 0.0
  %928 = vmatpush1.msra.mxu0 %v185
  %929 = vmatprep.subr.mxu0 0.0
  %930 = vmatpush1.msra.mxu0 %v186
  %931 = vmatprep.subr.mxu0 0.0
  %932 = vmatpush1.msra.mxu0 %v187
  %933 = vmatprep.subr.mxu0 0.0
  %934 = vmatpush1.msra.mxu0 0.0
  %935 = vmatprep.subr.mxu0 0.0
  %936 = vmatpush1.msra.mxu0 0.0
  %937 = vmatprep.subr.mxu0 0.0
  %938 = vmatpush1.msra.mxu0 0.0
  %939 = vmatprep.subr.mxu0 0.0
  %940 = vmatpush1.msra.mxu0 0.0
  %941 = vmatprep.subr.mxu0 0.0
  %942 = vmatpush1.msra.mxu0 0.0
  %943 = vmatprep.subr.mxu0 0.0
  %944 = vmatpush1.msra.mxu0 0.0
  %945 = vmatprep.subr.mxu0 0.0
  %946 = vmatpush1.msra.mxu0 0.0
  %947 = vmatprep.subr.mxu0 0.0
  %948 = vmatpush1.msra.mxu0 0.0
  %949 = vmatprep.subr.mxu0 0.0
  %950 = vmatpush1.msra.mxu0 0.0
  %951 = vmatprep.subr.mxu0 0.0
  %952 = vmatpush1.msra.mxu0 0.0
  %953 = vmatprep.subr.mxu0 0.0
  %954 = vmatpush1.msra.mxu0 0.0
  %955 = vmatprep.subr.mxu0 0.0
  %956 = vmatpush1.msra.mxu0 0.0
  %957 = vmatprep.subr.mxu0 0.0
  %958 = vmatpush1.msra.mxu0 0.0
  %959 = vmatprep.subr.mxu0 0.0
  %960 = vmatpush1.msra.mxu0 0.0
  %961 = vmatprep.subr.mxu0 0.0
  %962 = vmatpush1.msra.mxu0 0.0
  %963 = vmatprep.subr.mxu0 0.0
  %964 = vmatpush1.msra.mxu0 0.0
  %965 = vmatprep.mubr.f32.mxu0 0.0
  %966 = vmatmul.mubr.f32.gmra.mrb[0].mxu0 %v899
  %v967 = vpop.f32.mrb[0].mxu0
  %v968 = vadd.f32 0.0, %v967
  %v969 = vpop.f32.mrb[0].mxu0
  %970 = vdwg.mxu0
  %v971 = vld [vmem:[#allocation3 + $0x5] sm:$0x1]
  %v972 = vld [vmem:[#allocation3 + $0xd] sm:$0x1]
  %v973 = vld [vmem:[#allocation3 + $0x15] sm:$0x1]
  %v974 = vld [vmem:[#allocation3 + $0x1d] sm:$0x1]
  %v975 = vld [vmem:[#allocation3 + $0x25] sm:$0x1]
  %v976 = vld [vmem:[#allocation3 + $0x2d] sm:$0x1]
  %v977 = vld [vmem:[#allocation3 + $0x35] sm:$0x1]
  %v978 = vld [vmem:[#allocation3 + $0x3d] sm:$0x1]
  %v980 = vrot.slane %v968, 1
  %v981 = vrot.slane %v968, 2
  %v982 = vrot.slane %v968, 3
  %v983 = vrot.slane %v968, 4
  %v984 = vrot.slane %v968, 5
  %v985 = vrot.slane %v968, 6
  %v986 = vrot.slane %v968, 7
  %v995 = vadd.f32 %v971, %v968
  %v996 = vadd.f32 %v972, %v980
  %v997 = vadd.f32 %v973, %v981
  %v998 = vadd.f32 %v974, %v982
  %v999 = vadd.f32 %v975, %v983
  %v1000 = vadd.f32 %v976, %v984
  %v1001 = vadd.f32 %v977, %v985
  %v1002 = vadd.f32 %v978, %v986
  %v1003 = vtanh.pop %v995
  %v1004 = vtanh.pop %v996
  %v1005 = vtanh.pop %v997
  %v1006 = vtanh.pop %v998
  %v1007 = vtanh.pop %v999
  %v1008 = vtanh.pop %v1000
  %v1009 = vtanh.pop %v1001
  %v1010 = vtanh.pop %v1002
  %1011 = vst [vmem:[#allocation3 + $0x5] sm:$0x1] %v1003
  %1012 = vst [vmem:[#allocation3 + $0xd] sm:$0x1] %v1004
  %1013 = vst [vmem:[#allocation3 + $0x15] sm:$0x1] %v1005
  %1014 = vst [vmem:[#allocation3 + $0x1d] sm:$0x1] %v1006
  %1015 = vst [vmem:[#allocation3 + $0x25] sm:$0x1] %v1007
  %1016 = vst [vmem:[#allocation3 + $0x2d] sm:$0x1] %v1008
  %1017 = vst [vmem:[#allocation3 + $0x35] sm:$0x1] %v1009
  %1018 = vst [vmem:[#allocation3 + $0x3d] sm:$0x1] %v1010
  %v1027 = vrot.slane %v1004, 7
  %v1028 = vsel %vm316, %v1027, %v1003
  %v1029 = vrot.slane %v1005, 6
  %v1030 = vsel %vm319, %v1029, %v1028
  %v1031 = vrot.slane %v1006, 5
  %v1032 = vsel %vm322, %v1031, %v1030
  %v1033 = vrot.slane %v1007, 4
  %v1034 = vsel %vm325, %v1033, %v1032
  %v1035 = vrot.slane %v1008, 3
  %v1036 = vsel %vm328, %v1035, %v1034
  %v1037 = vrot.slane %v1009, 2
  %v1038 = vsel %vm331, %v1037, %v1036
  %v1039 = vrot.slane %v1010, 1
  %v1040 = vsel %vm334, %v1039, %v1038
  %1042 = vmatprep.subr.mxu0 0.0
  %1043 = vmatpush1.msra.mxu0 %v172
  %1044 = vmatprep.subr.mxu0 0.0
  %1045 = vmatpush1.msra.mxu0 %v173
  %1046 = vmatprep.subr.mxu0 0.0
  %1047 = vmatpush1.msra.mxu0 %v174
  %1048 = vmatprep.subr.mxu0 0.0
  %1049 = vmatpush1.msra.mxu0 %v175
  %1050 = vmatprep.subr.mxu0 0.0
  %1051 = vmatpush1.msra.mxu0 %v176
  %1052 = vmatprep.subr.mxu0 0.0
  %1053 = vmatpush1.msra.mxu0 %v177
  %1054 = vmatprep.subr.mxu0 0.0
  %1055 = vmatpush1.msra.mxu0 %v178
  %1056 = vmatprep.subr.mxu0 0.0
  %1057 = vmatpush1.msra.mxu0 %v179
  %1058 = vmatprep.subr.mxu0 0.0
  %1059 = vmatpush1.msra.mxu0 %v180
  %1060 = vmatprep.subr.mxu0 0.0
  %1061 = vmatpush1.msra.mxu0 %v181
  %1062 = vmatprep.subr.mxu0 0.0
  %1063 = vmatpush1.msra.mxu0 %v182
  %1064 = vmatprep.subr.mxu0 0.0
  %1065 = vmatpush1.msra.mxu0 %v183
  %1066 = vmatprep.subr.mxu0 0.0
  %1067 = vmatpush1.msra.mxu0 %v184
  %1068 = vmatprep.subr.mxu0 0.0
  %1069 = vmatpush1.msra.mxu0 %v185
  %1070 = vmatprep.subr.mxu0 0.0
  %1071 = vmatpush1.msra.mxu0 %v186
  %1072 = vmatprep.subr.mxu0 0.0
  %1073 = vmatpush1.msra.mxu0 %v187
  %1074 = vmatprep.subr.mxu0 0.0
  %1075 = vmatpush1.msra.mxu0 0.0
  %1076 = vmatprep.subr.mxu0 0.0
  %1077 = vmatpush1.msra.mxu0 0.0
  %1078 = vmatprep.subr.mxu0 0.0
  %1079 = vmatpush1.msra.mxu0 0.0
  %1080 = vmatprep.subr.mxu0 0.0
  %1081 = vmatpush1.msra.mxu0 0.0
  %1082 = vmatprep.subr.mxu0 0.0
  %1083 = vmatpush1.msra.mxu0 0.0
  %1084 = vmatprep.subr.mxu0 0.0
  %1085 = vmatpush1.msra.mxu0 0.0
  %1086 = vmatprep.subr.mxu0 0.0
  %1087 = vmatpush1.msra.mxu0 0.0
  %1088 = vmatprep.subr.mxu0 0.0
  %1089 = vmatpush1.msra.mxu0 0.0
  %1090 = vmatprep.subr.mxu0 0.0
  %1091 = vmatpush1.msra.mxu0 0.0
  %1092 = vmatprep.subr.mxu0 0.0
  %1093 = vmatpush1.msra.mxu0 0.0
  %1094 = vmatprep.subr.mxu0 0.0
  %1095 = vmatpush1.msra.mxu0 0.0
  %1096 = vmatprep.subr.mxu0 0.0
  %1097 = vmatpush1.msra.mxu0 0.0
  %1098 = vmatprep.subr.mxu0 0.0
  %1099 = vmatpush1.msra.mxu0 0.0
  %1100 = vmatprep.subr.mxu0 0.0
  %1101 = vmatpush1.msra.mxu0 0.0
  %1102 = vmatprep.subr.mxu0 0.0
  %1103 = vmatpush1.msra.mxu0 0.0
  %1104 = vmatprep.subr.mxu0 0.0
  %1105 = vmatpush1.msra.mxu0 0.0
  %1106 = vmatprep.mubr.f32.mxu0 0.0
  %1107 = vmatmul.mubr.f32.gmra.mrb[0].mxu0 %v1040
  %v1108 = vpop.f32.mrb[0].mxu0
  %v1109 = vadd.f32 0.0, %v1108
  %v1110 = vpop.f32.mrb[0].mxu0
  %1111 = vdwg.mxu0
  %v1112 = vld [vmem:[#allocation3 + $0x6] sm:$0x1]
  %v1113 = vld [vmem:[#allocation3 + $0xe] sm:$0x1]
  %v1114 = vld [vmem:[#allocation3 + $0x16] sm:$0x1]
  %v1115 = vld [vmem:[#allocation3 + $0x1e] sm:$0x1]
  %v1116 = vld [vmem:[#allocation3 + $0x26] sm:$0x1]
  %v1117 = vld [vmem:[#allocation3 + $0x2e] sm:$0x1]
  %v1118 = vld [vmem:[#allocation3 + $0x36] sm:$0x1]
  %v1119 = vld [vmem:[#allocation3 + $0x3e] sm:$0x1]
  %v1121 = vrot.slane %v1109, 1
  %v1122 = vrot.slane %v1109, 2
  %v1123 = vrot.slane %v1109, 3
  %v1124 = vrot.slane %v1109, 4
  %v1125 = vrot.slane %v1109, 5
  %v1126 = vrot.slane %v1109, 6
  %v1127 = vrot.slane %v1109, 7
  %v1136 = vadd.f32 %v1112, %v1109
  %v1137 = vadd.f32 %v1113, %v1121
  %v1138 = vadd.f32 %v1114, %v1122
  %v1139 = vadd.f32 %v1115, %v1123
  %v1140 = vadd.f32 %v1116, %v1124
  %v1141 = vadd.f32 %v1117, %v1125
  %v1142 = vadd.f32 %v1118, %v1126
  %v1143 = vadd.f32 %v1119, %v1127
  %v1144 = vtanh.pop %v1136
  %v1145 = vtanh.pop %v1137
  %v1146 = vtanh.pop %v1138
  %v1147 = vtanh.pop %v1139
  %v1148 = vtanh.pop %v1140
  %v1149 = vtanh.pop %v1141
  %v1150 = vtanh.pop %v1142
  %v1151 = vtanh.pop %v1143
  %1152 = vst [vmem:[#allocation3 + $0x6] sm:$0x1] %v1144
  %1153 = vst [vmem:[#allocation3 + $0xe] sm:$0x1] %v1145
  %1154 = vst [vmem:[#allocation3 + $0x16] sm:$0x1] %v1146
  %1155 = vst [vmem:[#allocation3 + $0x1e] sm:$0x1] %v1147
  %1156 = vst [vmem:[#allocation3 + $0x26] sm:$0x1] %v1148
  %1157 = vst [vmem:[#allocation3 + $0x2e] sm:$0x1] %v1149
  %1158 = vst [vmem:[#allocation3 + $0x36] sm:$0x1] %v1150
  %1159 = vst [vmem:[#allocation3 + $0x3e] sm:$0x1] %v1151
  %v1168 = vrot.slane %v1145, 7
  %v1169 = vsel %vm316, %v1168, %v1144
  %v1170 = vrot.slane %v1146, 6
  %v1171 = vsel %vm319, %v1170, %v1169
  %v1172 = vrot.slane %v1147, 5
  %v1173 = vsel %vm322, %v1172, %v1171
  %v1174 = vrot.slane %v1148, 4
  %v1175 = vsel %vm325, %v1174, %v1173
  %v1176 = vrot.slane %v1149, 3
  %v1177 = vsel %vm328, %v1176, %v1175
  %v1178 = vrot.slane %v1150, 2
  %v1179 = vsel %vm331, %v1178, %v1177
  %v1180 = vrot.slane %v1151, 1
  %v1181 = vsel %vm334, %v1180, %v1179
  %1183 = vmatprep.subr.mxu0 0.0
  %1184 = vmatpush1.msra.mxu0 %v172
  %1185 = vmatprep.subr.mxu0 0.0
  %1186 = vmatpush1.msra.mxu0 %v173
  %1187 = vmatprep.subr.mxu0 0.0
  %1188 = vmatpush1.msra.mxu0 %v174
  %1189 = vmatprep.subr.mxu0 0.0
  %1190 = vmatpush1.msra.mxu0 %v175
  %1191 = vmatprep.subr.mxu0 0.0
  %1192 = vmatpush1.msra.mxu0 %v176
  %1193 = vmatprep.subr.mxu0 0.0
  %1194 = vmatpush1.msra.mxu0 %v177
  %1195 = vmatprep.subr.mxu0 0.0
  %1196 = vmatpush1.msra.mxu0 %v178
  %1197 = vmatprep.subr.mxu0 0.0
  %1198 = vmatpush1.msra.mxu0 %v179
  %1199 = vmatprep.subr.mxu0 0.0
  %1200 = vmatpush1.msra.mxu0 %v180
  %1201 = vmatprep.subr.mxu0 0.0
  %1202 = vmatpush1.msra.mxu0 %v181
  %1203 = vmatprep.subr.mxu0 0.0
  %1204 = vmatpush1.msra.mxu0 %v182
  %1205 = vmatprep.subr.mxu0 0.0
  %1206 = vmatpush1.msra.mxu0 %v183
  %1207 = vmatprep.subr.mxu0 0.0
  %1208 = vmatpush1.msra.mxu0 %v184
  %1209 = vmatprep.subr.mxu0 0.0
  %1210 = vmatpush1.msra.mxu0 %v185
  %1211 = vmatprep.subr.mxu0 0.0
  %1212 = vmatpush1.msra.mxu0 %v186
  %1213 = vmatprep.subr.mxu0 0.0
  %1214 = vmatpush1.msra.mxu0 %v187
  %1215 = vmatprep.subr.mxu0 0.0
  %1216 = vmatpush1.msra.mxu0 0.0
  %1217 = vmatprep.subr.mxu0 0.0
  %1218 = vmatpush1.msra.mxu0 0.0
  %1219 = vmatprep.subr.mxu0 0.0
  %1220 = vmatpush1.msra.mxu0 0.0
  %1221 = vmatprep.subr.mxu0 0.0
  %1222 = vmatpush1.msra.mxu0 0.0
  %1223 = vmatprep.subr.mxu0 0.0
  %1224 = vmatpush1.msra.mxu0 0.0
  %1225 = vmatprep.subr.mxu0 0.0
  %1226 = vmatpush1.msra.mxu0 0.0
  %1227 = vmatprep.subr.mxu0 0.0
  %1228 = vmatpush1.msra.mxu0 0.0
  %1229 = vmatprep.subr.mxu0 0.0
  %1230 = vmatpush1.msra.mxu0 0.0
  %1231 = vmatprep.subr.mxu0 0.0
  %1232 = vmatpush1.msra.mxu0 0.0
  %1233 = vmatprep.subr.mxu0 0.0
  %1234 = vmatpush1.msra.mxu0 0.0
  %1235 = vmatprep.subr.mxu0 0.0
  %1236 = vmatpush1.msra.mxu0 0.0
  %1237 = vmatprep.subr.mxu0 0.0
  %1238 = vmatpush1.msra.mxu0 0.0
  %1239 = vmatprep.subr.mxu0 0.0
  %1240 = vmatpush1.msra.mxu0 0.0
  %1241 = vmatprep.subr.mxu0 0.0
  %1242 = vmatpush1.msra.mxu0 0.0
  %1243 = vmatprep.subr.mxu0 0.0
  %1244 = vmatpush1.msra.mxu0 0.0
  %1245 = vmatprep.subr.mxu0 0.0
  %1246 = vmatpush1.msra.mxu0 0.0
  %1247 = vmatprep.mubr.f32.mxu0 0.0
  %1248 = vmatmul.mubr.f32.gmra.mrb[0].mxu0 %v1181
  %v1249 = vpop.f32.mrb[0].mxu0
  %v1250 = vadd.f32 0.0, %v1249
  %v1251 = vpop.f32.mrb[0].mxu0
  %1252 = vdwg.mxu0
  %v1253 = vld [vmem:[#allocation3 + $0x7] sm:$0x1]
  %v1254 = vld [vmem:[#allocation3 + $0xf] sm:$0x1]
  %v1255 = vld [vmem:[#allocation3 + $0x17] sm:$0x1]
  %v1256 = vld [vmem:[#allocation3 + $0x1f] sm:$0x1]
  %v1257 = vld [vmem:[#allocation3 + $0x27] sm:$0x1]
  %v1258 = vld [vmem:[#allocation3 + $0x2f] sm:$0x1]
  %v1259 = vld [vmem:[#allocation3 + $0x37] sm:$0x1]
  %v1260 = vld [vmem:[#allocation3 + $0x3f] sm:$0x1]
  %v1262 = vrot.slane %v1250, 1
  %v1263 = vrot.slane %v1250, 2
  %v1264 = vrot.slane %v1250, 3
  %v1265 = vrot.slane %v1250, 4
  %v1266 = vrot.slane %v1250, 5
  %v1267 = vrot.slane %v1250, 6
  %v1268 = vrot.slane %v1250, 7
  %v1277 = vadd.f32 %v1253, %v1250
  %v1278 = vadd.f32 %v1254, %v1262
  %v1279 = vadd.f32 %v1255, %v1263
  %v1280 = vadd.f32 %v1256, %v1264
  %v1281 = vadd.f32 %v1257, %v1265
  %v1282 = vadd.f32 %v1258, %v1266
  %v1283 = vadd.f32 %v1259, %v1267
  %v1284 = vadd.f32 %v1260, %v1268
  %v1285 = vtanh.pop %v1277
  %v1286 = vtanh.pop %v1278
  %v1287 = vtanh.pop %v1279
  %v1288 = vtanh.pop %v1280
  %v1289 = vtanh.pop %v1281
  %v1290 = vtanh.pop %v1282
  %v1291 = vtanh.pop %v1283
  %v1292 = vtanh.pop %v1284
  %1293 = vst [vmem:[#allocation3 + $0x7] sm:$0x1] %v1285
  %1294 = vst [vmem:[#allocation3 + $0xf] sm:$0x1] %v1286
  %1295 = vst [vmem:[#allocation3 + $0x17] sm:$0x1] %v1287
  %1296 = vst [vmem:[#allocation3 + $0x1f] sm:$0x1] %v1288
  %1297 = vst [vmem:[#allocation3 + $0x27] sm:$0x1] %v1289
  %1298 = vst [vmem:[#allocation3 + $0x2f] sm:$0x1] %v1290
  %1299 = vst [vmem:[#allocation3 + $0x37] sm:$0x1] %v1291
  %1300 = vst [vmem:[#allocation3 + $0x3f] sm:$0x1] %v1292
  %v1309 = vrot.slane %v1286, 7
  %v1310 = vsel %vm316, %v1309, %v1285
  %v1311 = vrot.slane %v1287, 6
  %v1312 = vsel %vm319, %v1311, %v1310
  %v1313 = vrot.slane %v1288, 5
  %v1314 = vsel %vm322, %v1313, %v1312
  %v1315 = vrot.slane %v1289, 4
  %v1316 = vsel %vm325, %v1315, %v1314
  %v1317 = vrot.slane %v1290, 3
  %v1318 = vsel %vm328, %v1317, %v1316
  %v1319 = vrot.slane %v1291, 2
  %v1320 = vsel %vm331, %v1319, %v1318
  %v1321 = vrot.slane %v1292, 1
  %v1322 = vsel %vm334, %v1321, %v1320
  %1324 = vst [vmem:[#allocation2] sm:$0xff] %v1322
  %v1325 = vld [vmem:[#allocation3] sm:$0xff]
  %v1326 = vld [vmem:[#allocation3 + $0x8] sm:$0xff]
  %v1327 = vld [vmem:[#allocation3 + $0x10] sm:$0xff]
  %v1328 = vld [vmem:[#allocation3 + $0x18] sm:$0xff]
  %v1329 = vld [vmem:[#allocation3 + $0x20] sm:$0xff]
  %v1330 = vld [vmem:[#allocation3 + $0x28] sm:$0xff]
  %v1331 = vld [vmem:[#allocation3 + $0x30] sm:$0xff]
  %v1332 = vld [vmem:[#allocation3 + $0x38] sm:$0xff]
  %v1333 = vld [vmem:[%s3] sm:$0xff]
  %v1334 = vld [vmem:[%s3 + $0x8] sm:$0xff]
  %v1335 = vld [vmem:[%s3 + $0x10] sm:$0xff]
  %v1336 = vld [vmem:[%s3 + $0x18] sm:$0xff]
  %v1337 = vld [vmem:[%s3 + $0x20] sm:$0xff]
  %v1338 = vld [vmem:[%s3 + $0x28] sm:$0xff]
  %v1339 = vld [vmem:[%s3 + $0x30] sm:$0xff]
  %v1340 = vld [vmem:[%s3 + $0x38] sm:$0xff]
  %v1341 = vld [vmem:[%s3 + $0x40] sm:$0xff]
  %v1342 = vld [vmem:[%s3 + $0x48] sm:$0xff]
  %v1343 = vld [vmem:[%s3 + $0x50] sm:$0xff]
  %v1344 = vld [vmem:[%s3 + $0x58] sm:$0xff]
  %v1345 = vld [vmem:[%s3 + $0x60] sm:$0xff]
  %v1346 = vld [vmem:[%s3 + $0x68] sm:$0xff]
  %v1347 = vld [vmem:[%s3 + $0x70] sm:$0xff]
  %v1348 = vld [vmem:[%s3 + $0x78] sm:$0xff]
  %v1349 = vld [vmem:[%s5] sm:$0x1]
  %v1351 = vlaneseq
  %v1352 = vshrl.u32 %v1351, 7
  %v1353 = vsub.s32 0, %v1352
  %v1354 = vrot.slane %v1349, %v1353
  %1356 = vmatprep.subr.mxu0 0.0
  %1357 = vmatpush1.msra.mxu0 %v1333
  %1358 = vmatprep.subr.mxu0 0.0
  %1359 = vmatpush1.msra.mxu0 %v1334
  %1360 = vmatprep.subr.mxu0 0.0
  %1361 = vmatpush1.msra.mxu0 %v1335
  %1362 = vmatprep.subr.mxu0 0.0
  %1363 = vmatpush1.msra.mxu0 %v1336
  %1364 = vmatprep.subr.mxu0 0.0
  %1365 = vmatpush1.msra.mxu0 %v1337
  %1366 = vmatprep.subr.mxu0 0.0
  %1367 = vmatpush1.msra.mxu0 %v1338
  %1368 = vmatprep.subr.mxu0 0.0
  %1369 = vmatpush1.msra.mxu0 %v1339
  %1370 = vmatprep.subr.mxu0 0.0
  %1371 = vmatpush1.msra.mxu0 %v1340
  %1372 = vmatprep.subr.mxu0 0.0
  %1373 = vmatpush1.msra.mxu0 %v1341
  %1374 = vmatprep.subr.mxu0 0.0
  %1375 = vmatpush1.msra.mxu0 %v1342
  %1376 = vmatprep.subr.mxu0 0.0
  %1377 = vmatpush1.msra.mxu0 %v1343
  %1378 = vmatprep.subr.mxu0 0.0
  %1379 = vmatpush1.msra.mxu0 %v1344
  %1380 = vmatprep.subr.mxu0 0.0
  %1381 = vmatpush1.msra.mxu0 %v1345
  %1382 = vmatprep.subr.mxu0 0.0
  %1383 = vmatpush1.msra.mxu0 %v1346
  %1384 = vmatprep.subr.mxu0 0.0
  %1385 = vmatpush1.msra.mxu0 %v1347
  %1386 = vmatprep.subr.mxu0 0.0
  %1387 = vmatpush1.msra.mxu0 %v1348
  %1388 = vmatprep.subr.mxu0 0.0
  %1389 = vmatpush1.msra.mxu0 0.0
  %1390 = vmatprep.subr.mxu0 0.0
  %1391 = vmatpush1.msra.mxu0 0.0
  %1392 = vmatprep.subr.mxu0 0.0
  %1393 = vmatpush1.msra.mxu0 0.0
  %1394 = vmatprep.subr.mxu0 0.0
  %1395 = vmatpush1.msra.mxu0 0.0
  %1396 = vmatprep.subr.mxu0 0.0
  %1397 = vmatpush1.msra.mxu0 0.0
  %1398 = vmatprep.subr.mxu0 0.0
  %1399 = vmatpush1.msra.mxu0 0.0
  %1400 = vmatprep.subr.mxu0 0.0
  %1401 = vmatpush1.msra.mxu0 0.0
  %1402 = vmatprep.subr.mxu0 0.0
  %1403 = vmatpush1.msra.mxu0 0.0
  %1404 = vmatprep.subr.mxu0 0.0
  %1405 = vmatpush1.msra.mxu0 0.0
  %1406 = vmatprep.subr.mxu0 0.0
  %1407 = vmatpush1.msra.mxu0 0.0
  %1408 = vmatprep.subr.mxu0 0.0
  %1409 = vmatpush1.msra.mxu0 0.0
  %1410 = vmatprep.subr.mxu0 0.0
  %1411 = vmatpush1.msra.mxu0 0.0
  %1412 = vmatprep.subr.mxu0 0.0
  %1413 = vmatpush1.msra.mxu0 0.0
  %1414 = vmatprep.subr.mxu0 0.0
  %1415 = vmatpush1.msra.mxu0 0.0
  %1416 = vmatprep.subr.mxu0 0.0
  %1417 = vmatpush1.msra.mxu0 0.0
  %1418 = vmatprep.subr.mxu0 0.0
  %1419 = vmatpush1.msra.mxu0 0.0
  %1420 = vmatprep.mubr.f32.mxu0 0.0
  %1421 = vmatmul.mubr.f32.gmra.mrb[0].mxu0 %v1325
  %v1422 = vpop.f32.mrb[0].mxu0
  %v1423 = vadd.f32 %v1354, %v1422
  %v1424 = vpop.f32.mrb[0].mxu0
  %1425 = vmatprep.mubr.f32.mxu0 0.0
  %1426 = vmatmul.mubr.f32.gmra.mrb[0].mxu0 %v1326
  %v1427 = vpop.f32.mrb[0].mxu0
  %v1428 = vadd.f32 %v1354, %v1427
  %v1429 = vpop.f32.mrb[0].mxu0
  %1430 = vmatprep.mubr.f32.mxu0 0.0
  %1431 = vmatmul.mubr.f32.gmra.mrb[0].mxu0 %v1327
  %v1432 = vpop.f32.mrb[0].mxu0
  %v1433 = vadd.f32 %v1354, %v1432
  %v1434 = vpop.f32.mrb[0].mxu0
  %1435 = vmatprep.mubr.f32.mxu0 0.0
  %1436 = vmatmul.mubr.f32.gmra.mrb[0].mxu0 %v1328
  %v1437 = vpop.f32.mrb[0].mxu0
  %v1438 = vadd.f32 %v1354, %v1437
  %v1439 = vpop.f32.mrb[0].mxu0
  %1440 = vmatprep.mubr.f32.mxu0 0.0
  %1441 = vmatmul.mubr.f32.gmra.mrb[0].mxu0 %v1329
  %v1442 = vpop.f32.mrb[0].mxu0
  %v1443 = vadd.f32 %v1354, %v1442
  %v1444 = vpop.f32.mrb[0].mxu0
  %1445 = vmatprep.mubr.f32.mxu0 0.0
  %1446 = vmatmul.mubr.f32.gmra.mrb[0].mxu0 %v1330
  %v1447 = vpop.f32.mrb[0].mxu0
  %v1448 = vadd.f32 %v1354, %v1447
  %v1449 = vpop.f32.mrb[0].mxu0
  %1450 = vmatprep.mubr.f32.mxu0 0.0
  %1451 = vmatmul.mubr.f32.gmra.mrb[0].mxu0 %v1331
  %v1452 = vpop.f32.mrb[0].mxu0
  %v1453 = vadd.f32 %v1354, %v1452
  %v1454 = vpop.f32.mrb[0].mxu0
  %1455 = vmatprep.mubr.f32.mxu0 0.0
  %1456 = vmatmul.mubr.f32.gmra.mrb[0].mxu0 %v1332
  %v1457 = vpop.f32.mrb[0].mxu0
  %v1458 = vadd.f32 %v1354, %v1457
  %v1459 = vpop.f32.mrb[0].mxu0
  %1460 = vdwg.mxu0
  %1461 = vst [vmem:[%s6] sm:$0xff] %v1423
  %1462 = vst [vmem:[%s6 + $0x8] sm:$0xff] %v1428
  %1463 = vst [vmem:[%s6 + $0x10] sm:$0xff] %v1433
  %1464 = vst [vmem:[%s6 + $0x18] sm:$0xff] %v1438
  %1465 = vst [vmem:[%s6 + $0x20] sm:$0xff] %v1443
  %1466 = vst [vmem:[%s6 + $0x28] sm:$0xff] %v1448
  %1467 = vst [vmem:[%s6 + $0x30] sm:$0xff] %v1453
  %1468 = vst [vmem:[%s6 + $0x38] sm:$0xff] %v1458
  // Predicated region
  $region30: #{simple_rnn_forward.1} parent=0 // pred_check
    _
  $region31: #{simple_rnn_forward.1} parent=0 // pred_check_branch
    %1470 = sbr.rel (0) target = $region33
  $region32: #{simple_rnn_forward.1} parent=0 // pred_region
    _
  $region33: #{simple_rnn_forward.1} parent=0 // pred_fallthru
    _
  // Predicated region
  $region34: #{simple_rnn_forward.1} parent=0 // pred_check
    _
  $region35: #{simple_rnn_forward.1} parent=0 // pred_check_branch
    %1472 = sbr.rel (0) target = $region37
  $region36: #{simple_rnn_forward.1} parent=0 // pred_region
    _
  $region37: #{simple_rnn_forward.1} parent=0 // pred_fallthru
    _

</llo_original>
